<compile_context>
chip_gen: v5e
topology: v5e:2x2
jax: 0.10.0
libtpu: 0.0.40
codegen_flags: <defaults>
</compile_context>

<pallas_src>
import functools

import numpy as np
import jax
import jax.numpy as jnp
from jax.experimental import pallas as pl
from jax.experimental.pallas import tpu as pltpu

LANE = 128
SUBLANE = 8


def _round_up(x, m):
    return ((x + m - 1) // m) * m


# ----------------------------------------------------------------------------
# Fused Pallas kernel: the entire gated MLP in one call (one M tile per step).
# ----------------------------------------------------------------------------
def fused_decode_mlp_kernel(x_ref, *refs, dout_pads):
    """refs layout: w_0 .. w_{L-1}, bias_ref, o_ref.

      w_l      : (Kpad_l, 2*Dpad_l) bf16  -- [Wh*bn_scale | Wg], lane-padded
      bias_ref : (1, total)          f32  -- per layer [bh*scale|bg] (+ shift)
      dout_pads: static tuple of padded per-layer output widths (multiples of 128)
    """
    n_layers = len(dout_pads)
    w_refs = refs[:n_layers]
    bias_ref = refs[n_layers]
    o_ref = refs[n_layers + 1]

    out = x_ref[...]                              # bf16 (tile_m, K0), stays on-chip
    off = 0
    for l in range(n_layers):
        last = l == n_layers - 1
        dpad = dout_pads[l]
        # One MXU matmul per layer on the concatenated [Wh|Wg] weight:
        # bf16 operands, f32 accumulation.
        hg = jnp.dot(out, w_refs[l][...], preferred_element_type=jnp.float32)
        hg = hg + bias_ref[:, off:off + 2 * dpad]          # [bh*scale | bg]
        off += 2 * dpad
        # Lane-aligned split (dpad is a multiple of 128) + gating (f32 epilogue).
        act = hg[:, :dpad] * jax.nn.sigmoid(hg[:, dpad:])
        if not last:
            # eval-mode BatchNorm affine (scale folded into Wh/bh) -> ReLU.
            # Dropout(p=0.3) is identity in eval mode.
            act = jnp.maximum(act + bias_ref[:, off:off + dpad], 0.0)
            off += dpad
            out = act.astype(jnp.bfloat16)        # carry activation in bf16
        else:
            out = act
    o_ref[...] = out.astype(o_ref.dtype)


# ----------------------------------------------------------------------------
# One-time parameter packing: fold eval-BN scale, concat [Wh|Wg], lane-pad to
# 128-column halves, pack all biases/shifts into one flat f32 buffer, cast
# weights to bf16.
# ----------------------------------------------------------------------------
def prepare_kernel_params(params, eps=1e-5, weight_dtype=jnp.bfloat16):
    n = len(params)
    weights = []
    bias_sections = []
    kin_pad = params[0]["wh"].shape[0]            # layer-0 K unpadded (full-extent block)

    def pad2(a, rows, cols):
        return jnp.pad(a, ((0, rows - a.shape[0]), (0, cols - a.shape[1])))

    for l, p in enumerate(params):
        last = l == n - 1
        din, dout = p["wh"].shape
        dpad = _round_up(dout, LANE)
        if not last:
            scale = p["gamma"] / jnp.sqrt(p["running_var"] + eps)   # (1, dout)
            shift = p["beta"] - p["running_mean"] * scale           # (1, dout)
            wh = p["wh"] * scale
            bh = p["bh"] * scale
        else:
            wh, bh, shift = p["wh"], p["bh"], None

        kin = din if l == 0 else kin_pad
        whg = jnp.concatenate([pad2(wh, kin, dpad), pad2(p["wg"], kin, dpad)],
                              axis=1).astype(weight_dtype)
        weights.append(whg)
        bias_sections.append(jnp.concatenate([pad2(bh, 1, dpad),
                                              pad2(p["bg"], 1, dpad)], axis=1))
        if not last:
            bias_sections.append(pad2(shift, 1, dpad))
        kin_pad = dpad

    bias = jnp.concatenate(bias_sections, axis=1).astype(jnp.float32)
    return weights, bias


# ----------------------------------------------------------------------------
# Forward wrapper: reshape -> single pallas_call (M-tile grid) -> slice/reshape.
# ----------------------------------------------------------------------------
@functools.partial(jax.jit, static_argnames=("out_size",))
def decode_mlp_forward(x, weights, bias, *, out_size):
    """x: (B, C, H, W) -> (B, *out_size)."""
    B = x.shape[0]
    in_size = int(np.prod(x.shape[1:]))
    out_flat = int(np.prod(out_size))
    dout_pads = tuple(int(w.shape[1]) // 2 for w in weights)
    out_pad = dout_pads[-1]

    # M tiling: sublane-align tiny batches; 256-row tiles once batched so the
    # "parallel" grid shards M tiles across v7x's two TensorCores.
    tile_m = 256 if B >= 256 else _round_up(max(B, 1), SUBLANE)
    padded_B = _round_up(B, tile_m)
    grid_m = padded_B // tile_m

    x2d = x.reshape(B, -1).astype(jnp.bfloat16)           # inputs.view(B, -1)
    if padded_B != B:
        x2d = jnp.pad(x2d, ((0, padded_B - B), (0, 0)))

    # Advisory cost so XLA can schedule/overlap around the custom call.
    flops = sum(2 * padded_B * int(w.shape[0]) * int(w.shape[1]) for w in weights)
    trans = sum(padded_B * d for d in dout_pads)           # ~1 exp per sigmoid elem
    bytes_acc = (padded_B * in_size * 2 + int(bias.size) * 4
                 + padded_B * out_pad * 4
                 + sum(int(np.prod(w.shape)) * 2 for w in weights))
    cost = pl.CostEstimate(flops=flops, transcendentals=trans,
                           bytes_accessed=bytes_acc)

    # Activation / output blocks advance with the M grid; weights and the
    # packed bias buffer use constant index_maps -> resident, no per-tile DMA.
    in_specs = [pl.BlockSpec((tile_m, in_size), lambda i: (i, 0))]
    for w in weights:
        in_specs.append(pl.BlockSpec(w.shape, lambda i: (0, 0)))
    in_specs.append(pl.BlockSpec(bias.shape, lambda i: (0, 0)))

    out2d = pl.pallas_call(
        functools.partial(fused_decode_mlp_kernel, dout_pads=dout_pads),
        grid=(grid_m,),
        out_shape=jax.ShapeDtypeStruct((padded_B, out_pad), jnp.float32),
        in_specs=in_specs,
        out_specs=pl.BlockSpec((tile_m, out_pad), lambda i: (i, 0)),
        compiler_params=pltpu.CompilerParams(
            dimension_semantics=("parallel",),
            vmem_limit_bytes=32 * 1024 * 1024),
        cost_estimate=cost,
    )(x2d, *weights, bias)

    return out2d[:B, :out_flat].reshape((B,) + tuple(out_size))


# ----------------------------------------------------------------------------
# Parameter construction (torch-equivalent layout) + pure-JAX reference.
# ----------------------------------------------------------------------------
def init_decode_mlp_params(key, in_size, out_flat, hidden_size, n_layers):
    params = []
    for l in range(n_layers):
        in_s = in_size if l == 0 else hidden_size
        out_s = out_flat if l == n_layers - 1 else hidden_size
        key, k0, k1, k2, k3, k4, k5 = jax.random.split(key, 7)
        layer = {
            "wh": jax.random.uniform(k0, (in_s, out_s), jnp.float32, -0.01, 0.01),
            "bh": jax.random.uniform(k1, (1, out_s), jnp.float32, -0.01, 0.01),
            "wg": jax.random.uniform(k2, (in_s, out_s), jnp.float32, -0.01, 0.01),
            "bg": jax.random.uniform(k3, (1, out_s), jnp.float32, -0.01, 0.01),
            # BatchNorm1d params / running stats (eval mode)
            "gamma": jax.random.uniform(k4, (1, out_s), jnp.float32, 0.9, 1.1),
            "beta": jax.random.uniform(k5, (1, out_s), jnp.float32, -0.01, 0.01),
            "running_mean": jnp.zeros((1, out_s), jnp.float32),
            "running_var": jnp.ones((1, out_s), jnp.float32),
        }
        params.append(layer)
    return params


def decode_mlp_reference(x, params, out_size):
    B = x.shape[0]
    out = x.reshape(B, -1).astype(jnp.float32)
    eps = 1e-5
    n = len(params)
    for l, p in enumerate(params):
        h = out @ p["wh"] + p["bh"]
        g = out @ p["wg"] + p["bg"]
        out = h * jax.nn.sigmoid(g)
        if l < n - 1:
            out = (out - p["running_mean"]) / jnp.sqrt(p["running_var"] + eps)
            out = out * p["gamma"] + p["beta"]
            out = jnp.maximum(out, 0.0)
    return out.reshape((B,) + tuple(out_size))


if __name__ == "__main__":
    key = jax.random.PRNGKey(0)
    kx, kp = jax.random.split(key)

    # Small, consistent shapes: NCHW input, decode back to the same image size.
    B, C, H, W = 2, 4, 16, 16
    out_size = (4, 16, 16)
    in_size = C * H * W                                   # 1024
    out_flat = out_size[0] * out_size[1] * out_size[2]    # np.prod(out_size) = 1024
    hidden_size = 32
    n_layers = 4

    x = jax.random.normal(kx, (B, C, H, W), jnp.float32)
    params = init_decode_mlp_params(kp, in_size, out_flat, hidden_size, n_layers)

    # One-time packing: fold BN, concat + lane-pad [Wh|Wg], pack biases, bf16 cast.
    weights, bias = prepare_kernel_params(params)

    out = decode_mlp_forward(x, weights, bias, out_size=out_size)
    out = jax.block_until_ready(out)

    ref = decode_mlp_reference(x, params, out_size)
    assert out.shape == (B,) + out_size, out.shape
    # Tolerance loosened vs. pure-f32 because weights/activations stream as
    # bf16 (f32 MXU accumulation); lane padding itself is numerically exact.
    assert jnp.allclose(out, ref, atol=2e-3, rtol=2e-2), \
        float(jnp.max(jnp.abs(out - ref)))

    print("KERNEL_OK")
</pallas_src>

<mosaic_0001>
module attributes {stable_mosaic.version = 11 : i64} {
  func.func @fused_decode_mlp_kernel(%arg0: i32, %arg1: memref<8x1024xbf16, #tpu.memory_space<vmem>>, %arg2: memref<1024x256xbf16, #tpu.memory_space<vmem>>, %arg3: memref<128x256xbf16, #tpu.memory_space<vmem>>, %arg4: memref<128x256xbf16, #tpu.memory_space<vmem>>, %arg5: memref<128x2048xbf16, #tpu.memory_space<vmem>>, %arg6: memref<1x3200xf32, #tpu.memory_space<vmem>>, %arg7: memref<8x1024xf32, #tpu.memory_space<vmem>>) attributes {dimension_semantics = [#tpu.dimension_semantics<parallel>], iteration_bounds = array<i64: 1>, scalar_prefetch = 0 : i64, scratch_operands = 0 : i64, tpu.core_type = #tpu.core_type<tc>, window_params = [{transform_indices = @transform_0, window_bounds = array<i64: 8, 1024>}, {pipeline_mode = #tpu.pipeline_mode<synchronous>, transform_indices = @transform_1, window_bounds = array<i64: 1024, 256>}, {pipeline_mode = #tpu.pipeline_mode<synchronous>, transform_indices = @transform_2, window_bounds = array<i64: 128, 256>}, {pipeline_mode = #tpu.pipeline_mode<synchronous>, transform_indices = @transform_3, window_bounds = array<i64: 128, 256>}, {pipeline_mode = #tpu.pipeline_mode<synchronous>, transform_indices = @transform_4, window_bounds = array<i64: 128, 2048>}, {pipeline_mode = #tpu.pipeline_mode<synchronous>, transform_indices = @transform_5, window_bounds = array<i64: 1, 3200>}, {transform_indices = @transform_6, window_bounds = array<i64: 8, 1024>}]} {
    %c0 = arith.constant 0 : index
    %c0_0 = arith.constant 0 : index
    %0 = vector.load %arg1[%c0, %c0_0] : memref<8x1024xbf16, #tpu.memory_space<vmem>>, vector<8x1024xbf16>
    %c0_1 = arith.constant 0 : index
    %c0_2 = arith.constant 0 : index
    %1 = vector.load %arg2[%c0_1, %c0_2] : memref<1024x256xbf16, #tpu.memory_space<vmem>>, vector<1024x256xbf16>
    %cst = arith.constant dense<0.000000e+00> : vector<8x256xf32>
    %2 = tpu.matmul %0, %1, %cst {dimension_numbers = #tpu.dot_dimension_numbers<[1], [0], [0], [1], [0, 0, 1, 1], [], []>} : vector<8x1024xbf16>, vector<1024x256xbf16>, vector<8x256xf32> -> vector<8x256xf32>
    %c0_3 = arith.constant 0 : index
    %c0_4 = arith.constant 0 : index
    %3 = vector.load %arg6[%c0_3, %c0_4] : memref<1x3200xf32, #tpu.memory_space<vmem>>, vector<1x256xf32>
    %4 = vector.broadcast %3 : vector<1x256xf32> to vector<8x256xf32>
    %5 = arith.addf %2, %4 : vector<8x256xf32>
    %6 = vector.extract_strided_slice %5 {offsets = [0, 0], sizes = [8, 128], strides = [1, 1]} : vector<8x256xf32> to vector<8x128xf32>
    %7 = vector.extract_strided_slice %5 {offsets = [0, 128], sizes = [8, 128], strides = [1, 1]} : vector<8x256xf32> to vector<8x128xf32>
    %8 = arith.negf %7 : vector<8x128xf32>
    %9 = math.exp %8 : vector<8x128xf32>
    %cst_5 = arith.constant 1.000000e+00 : f32
    %10 = vector.broadcast %cst_5 : f32 to vector<8x128xf32>
    %11 = arith.addf %10, %9 : vector<8x128xf32>
    %12 = arith.divf %10, %11 : vector<8x128xf32>
    %13 = arith.mulf %6, %12 : vector<8x128xf32>
    %c0_6 = arith.constant 0 : index
    %c256 = arith.constant 256 : index
    %14 = vector.load %arg6[%c0_6, %c256] : memref<1x3200xf32, #tpu.memory_space<vmem>>, vector<1x128xf32>
    %15 = vector.broadcast %14 : vector<1x128xf32> to vector<8x128xf32>
    %16 = arith.addf %13, %15 : vector<8x128xf32>
    %cst_7 = arith.constant 0.000000e+00 : f32
    %17 = vector.broadcast %cst_7 : f32 to vector<8x128xf32>
    %18 = arith.maximumf %16, %17 : vector<8x128xf32>
    %19 = arith.truncf %18 : vector<8x128xf32> to vector<8x128xbf16>
    %c0_8 = arith.constant 0 : index
    %c0_9 = arith.constant 0 : index
    %20 = vector.load %arg3[%c0_8, %c0_9] : memref<128x256xbf16, #tpu.memory_space<vmem>>, vector<128x256xbf16>
    %cst_10 = arith.constant dense<0.000000e+00> : vector<8x256xf32>
    %21 = tpu.matmul %19, %20, %cst_10 {dimension_numbers = #tpu.dot_dimension_numbers<[1], [0], [0], [1], [0, 0, 1, 1], [], []>} : vector<8x128xbf16>, vector<128x256xbf16>, vector<8x256xf32> -> vector<8x256xf32>
    %c0_11 = arith.constant 0 : index
    %c384 = arith.constant 384 : index
    %22 = vector.load %arg6[%c0_11, %c384] : memref<1x3200xf32, #tpu.memory_space<vmem>>, vector<1x256xf32>
    %23 = vector.broadcast %22 : vector<1x256xf32> to vector<8x256xf32>
    %24 = arith.addf %21, %23 : vector<8x256xf32>
    %25 = vector.extract_strided_slice %24 {offsets = [0, 0], sizes = [8, 128], strides = [1, 1]} : vector<8x256xf32> to vector<8x128xf32>
    %26 = vector.extract_strided_slice %24 {offsets = [0, 128], sizes = [8, 128], strides = [1, 1]} : vector<8x256xf32> to vector<8x128xf32>
    %27 = arith.negf %26 : vector<8x128xf32>
    %28 = math.exp %27 : vector<8x128xf32>
    %cst_12 = arith.constant 1.000000e+00 : f32
    %29 = vector.broadcast %cst_12 : f32 to vector<8x128xf32>
    %30 = arith.addf %29, %28 : vector<8x128xf32>
    %31 = arith.divf %29, %30 : vector<8x128xf32>
    %32 = arith.mulf %25, %31 : vector<8x128xf32>
    %c0_13 = arith.constant 0 : index
    %c640 = arith.constant 640 : index
    %33 = vector.load %arg6[%c0_13, %c640] : memref<1x3200xf32, #tpu.memory_space<vmem>>, vector<1x128xf32>
    %34 = vector.broadcast %33 : vector<1x128xf32> to vector<8x128xf32>
    %35 = arith.addf %32, %34 : vector<8x128xf32>
    %cst_14 = arith.constant 0.000000e+00 : f32
    %36 = vector.broadcast %cst_14 : f32 to vector<8x128xf32>
    %37 = arith.maximumf %35, %36 : vector<8x128xf32>
    %38 = arith.truncf %37 : vector<8x128xf32> to vector<8x128xbf16>
    %c0_15 = arith.constant 0 : index
    %c0_16 = arith.constant 0 : index
    %39 = vector.load %arg4[%c0_15, %c0_16] : memref<128x256xbf16, #tpu.memory_space<vmem>>, vector<128x256xbf16>
    %cst_17 = arith.constant dense<0.000000e+00> : vector<8x256xf32>
    %40 = tpu.matmul %38, %39, %cst_17 {dimension_numbers = #tpu.dot_dimension_numbers<[1], [0], [0], [1], [0, 0, 1, 1], [], []>} : vector<8x128xbf16>, vector<128x256xbf16>, vector<8x256xf32> -> vector<8x256xf32>
    %c0_18 = arith.constant 0 : index
    %c768 = arith.constant 768 : index
    %41 = vector.load %arg6[%c0_18, %c768] : memref<1x3200xf32, #tpu.memory_space<vmem>>, vector<1x256xf32>
    %42 = vector.broadcast %41 : vector<1x256xf32> to vector<8x256xf32>
    %43 = arith.addf %40, %42 : vector<8x256xf32>
    %44 = vector.extract_strided_slice %43 {offsets = [0, 0], sizes = [8, 128], strides = [1, 1]} : vector<8x256xf32> to vector<8x128xf32>
    %45 = vector.extract_strided_slice %43 {offsets = [0, 128], sizes = [8, 128], strides = [1, 1]} : vector<8x256xf32> to vector<8x128xf32>
    %46 = arith.negf %45 : vector<8x128xf32>
    %47 = math.exp %46 : vector<8x128xf32>
    %cst_19 = arith.constant 1.000000e+00 : f32
    %48 = vector.broadcast %cst_19 : f32 to vector<8x128xf32>
    %49 = arith.addf %48, %47 : vector<8x128xf32>
    %50 = arith.divf %48, %49 : vector<8x128xf32>
    %51 = arith.mulf %44, %50 : vector<8x128xf32>
    %c0_20 = arith.constant 0 : index
    %c1024 = arith.constant 1024 : index
    %52 = vector.load %arg6[%c0_20, %c1024] : memref<1x3200xf32, #tpu.memory_space<vmem>>, vector<1x128xf32>
    %53 = vector.broadcast %52 : vector<1x128xf32> to vector<8x128xf32>
    %54 = arith.addf %51, %53 : vector<8x128xf32>
    %cst_21 = arith.constant 0.000000e+00 : f32
    %55 = vector.broadcast %cst_21 : f32 to vector<8x128xf32>
    %56 = arith.maximumf %54, %55 : vector<8x128xf32>
    %57 = arith.truncf %56 : vector<8x128xf32> to vector<8x128xbf16>
    %c0_22 = arith.constant 0 : index
    %c0_23 = arith.constant 0 : index
    %58 = vector.load %arg5[%c0_22, %c0_23] : memref<128x2048xbf16, #tpu.memory_space<vmem>>, vector<128x2048xbf16>
    %cst_24 = arith.constant dense<0.000000e+00> : vector<8x2048xf32>
    %59 = tpu.matmul %57, %58, %cst_24 {dimension_numbers = #tpu.dot_dimension_numbers<[1], [0], [0], [1], [0, 0, 1, 1], [], []>} : vector<8x128xbf16>, vector<128x2048xbf16>, vector<8x2048xf32> -> vector<8x2048xf32>
    %c0_25 = arith.constant 0 : index
    %c1152 = arith.constant 1152 : index
    %60 = vector.load %arg6[%c0_25, %c1152] : memref<1x3200xf32, #tpu.memory_space<vmem>>, vector<1x2048xf32>
    %61 = vector.broadcast %60 : vector<1x2048xf32> to vector<8x2048xf32>
    %62 = arith.addf %59, %61 : vector<8x2048xf32>
    %63 = vector.extract_strided_slice %62 {offsets = [0, 0], sizes = [8, 1024], strides = [1, 1]} : vector<8x2048xf32> to vector<8x1024xf32>
    %64 = vector.extract_strided_slice %62 {offsets = [0, 1024], sizes = [8, 1024], strides = [1, 1]} : vector<8x2048xf32> to vector<8x1024xf32>
    %65 = arith.negf %64 : vector<8x1024xf32>
    %66 = math.exp %65 : vector<8x1024xf32>
    %cst_26 = arith.constant 1.000000e+00 : f32
    %67 = vector.broadcast %cst_26 : f32 to vector<8x1024xf32>
    %68 = arith.addf %67, %66 : vector<8x1024xf32>
    %69 = arith.divf %67, %68 : vector<8x1024xf32>
    %70 = arith.mulf %63, %69 : vector<8x1024xf32>
    %c0_27 = arith.constant 0 : index
    %c0_28 = arith.constant 0 : index
    %71 = vector.load %arg7[%c0_27, %c0_28] : memref<8x1024xf32, #tpu.memory_space<vmem>>, vector<8x1024xf32>
    tpu.vector_store %arg7[%c0_27, %c0_28], %70 {strides = array<i32>} : memref<8x1024xf32, #tpu.memory_space<vmem>>, vector<8x1024xf32>,
    return
  }
  func.func @transform_0(%arg0: i32) -> (i32, i32) {
    %c0_i32 = arith.constant 0 : i32
    %c0_i32_0 = arith.constant 0 : i32
    return %arg0, %c0_i32 : i32, i32
  }
  func.func @transform_1(%arg0: i32) -> (i32, i32) {
    %c0_i32 = arith.constant 0 : i32
    %c0_i32_0 = arith.constant 0 : i32
    %c0_i32_1 = arith.constant 0 : i32
    return %c0_i32, %c0_i32_0 : i32, i32
  }
  func.func @transform_2(%arg0: i32) -> (i32, i32) {
    %c0_i32 = arith.constant 0 : i32
    %c0_i32_0 = arith.constant 0 : i32
    %c0_i32_1 = arith.constant 0 : i32
    return %c0_i32, %c0_i32_0 : i32, i32
  }
  func.func @transform_3(%arg0: i32) -> (i32, i32) {
    %c0_i32 = arith.constant 0 : i32
    %c0_i32_0 = arith.constant 0 : i32
    %c0_i32_1 = arith.constant 0 : i32
    return %c0_i32, %c0_i32_0 : i32, i32
  }
  func.func @transform_4(%arg0: i32) -> (i32, i32) {
    %c0_i32 = arith.constant 0 : i32
    %c0_i32_0 = arith.constant 0 : i32
    %c0_i32_1 = arith.constant 0 : i32
    return %c0_i32, %c0_i32_0 : i32, i32
  }
  func.func @transform_5(%arg0: i32) -> (i32, i32) {
    %c0_i32 = arith.constant 0 : i32
    %c0_i32_0 = arith.constant 0 : i32
    %c0_i32_1 = arith.constant 0 : i32
    return %c0_i32, %c0_i32_0 : i32, i32
  }
  func.func @transform_6(%arg0: i32) -> (i32, i32) {
    %c0_i32 = arith.constant 0 : i32
    %c0_i32_0 = arith.constant 0 : i32
    return %arg0, %c0_i32 : i32, i32
  }
}

</mosaic_0001>

<llo_original>
// kernel: decode_mlp_forward.1
$region0: #{decode_mlp_forward.1}
  #allocation0 [shape = 'u32[]', space=smem, size = 0x4, offset = 0x4, fixed_abs, tag = 'smem constant byte address 0x4 - core index']
  #allocation1 [shape = 'u32[72,128]{1,0:T(1,128)}', space=vmem, size = 0x9000, scoped, tag = 'internal scratch']
  %s0 = inlined_call_operand.vmem [shape: bf16[8,1024], index: 0, kind: input, shape index: {}]
  %s1 = inlined_call_operand.hbm [shape: bf16[1024,256], index: 1, kind: input, shape index: {}]
  %s2 = inlined_call_operand.vmem [shape: bf16[128,256], index: 2, kind: input, shape index: {}]
  %s3 = inlined_call_operand.vmem [shape: bf16[128,256], index: 3, kind: input, shape index: {}]
  %s4 = inlined_call_operand.hbm [shape: bf16[128,2048], index: 4, kind: input, shape index: {}]
  %s5 = inlined_call_operand.vmem [shape: f32[1,3200], index: 5, kind: input, shape index: {}]
  %s6 = inlined_call_operand.vmem [shape: f32[8,1024], index: 6, kind: output, shape index: {}]
  %s7 = sld [smem:[#allocation0]]
  $region42: #{decode_mlp_forward.1} parent=0
    _
  %s9 = ssub.s32 1, %s7
  %s10 = scalar_select 0, %s9, %s7
  $region1: #{decode_mlp_forward.1} parent=0
    #allocation2 [shape = 'u8[524288]{0}', space=vmem, size = 0x80000, scoped, tag = 'input window, operand 1, single buffered']
    #allocation3 [shape = 's32[1]{0}', space=sflag, size = 0x4, scoped, tag = 'scoped memory for decode_mlp_forward.1']
    #allocation4 [shape = 'u8[524288]{0}', space=vmem, size = 0x80000, scoped, tag = 'input window, operand 4, single buffered']
    #allocation5 [shape = 's32[1]{0}', space=sflag, size = 0x4, scoped, tag = 'scoped memory for decode_mlp_forward.1']
    %11 = vsyncpa [#allocation3], 0
    %12 = vsyncpa [#allocation5], 0
    // Predicated region
    $region2: #{decode_mlp_forward.1} parent=1 // pred_check
      _
    $region3: #{decode_mlp_forward.1} parent=1 // pred_check_branch
      %14 = sbr.rel (0) target = $region5
    $region4: #{decode_mlp_forward.1} parent=1 // pred_region
      _
    $region5: #{decode_mlp_forward.1} parent=1 // pred_fallthru
      _
    // Predicated region
    $region6: #{decode_mlp_forward.1} parent=1 // pred_check
      _
    $region7: #{decode_mlp_forward.1} parent=1 // pred_check_branch
      %16 = sbr.rel (0) target = $region9
    $region8: #{decode_mlp_forward.1} parent=1 // pred_region
      %18 = vsyncadd [#allocation3], 0
      %s19 = sshll.u32 %s1, 4
      %s20 = int_to_ptr.hbm [resolvable:$true] %s19
      %s21 = sshll.u32 [#allocation2], 4
      %s22 = int_to_ptr.vmem [resolvable:$true] %s21
      %27 = dma.hbm_to_vmem [thread:$0]  %s20, 16384, %s22, [#allocation3], 128, 128, 8
    $region9: #{decode_mlp_forward.1} parent=1 // pred_fallthru
      _
    // Predicated region
    $region10: #{decode_mlp_forward.1} parent=1 // pred_check
      _
    $region11: #{decode_mlp_forward.1} parent=1 // pred_check_branch
      %29 = sbr.rel (0) target = $region13
    $region12: #{decode_mlp_forward.1} parent=1 // pred_region
      _
    $region13: #{decode_mlp_forward.1} parent=1 // pred_fallthru
      _
    // Predicated region
    $region14: #{decode_mlp_forward.1} parent=1 // pred_check
      _
    $region15: #{decode_mlp_forward.1} parent=1 // pred_check_branch
      %31 = sbr.rel (0) target = $region17
    $region16: #{decode_mlp_forward.1} parent=1 // pred_region
      _
    $region17: #{decode_mlp_forward.1} parent=1 // pred_fallthru
      _
    // Predicated region
    $region18: #{decode_mlp_forward.1} parent=1 // pred_check
      _
    $region19: #{decode_mlp_forward.1} parent=1 // pred_check_branch
      %33 = sbr.rel (0) target = $region21
    $region20: #{decode_mlp_forward.1} parent=1 // pred_region
      %35 = vsyncadd [#allocation5], 0
      %s36 = sshll.u32 %s4, 4
      %s37 = int_to_ptr.hbm [resolvable:$true] %s36
      %s38 = sshll.u32 [#allocation4], 4
      %s39 = int_to_ptr.vmem [resolvable:$true] %s38
      %44 = dma.hbm_to_vmem [thread:$0]  %s37, 16384, %s39, [#allocation5], 1024, 1024, 64
    $region21: #{decode_mlp_forward.1} parent=1 // pred_fallthru
      _
    // Predicated region
    $region22: #{decode_mlp_forward.1} parent=1 // pred_check
      _
    $region23: #{decode_mlp_forward.1} parent=1 // pred_check_branch
      %46 = sbr.rel (0) target = $region25
    $region24: #{decode_mlp_forward.1} parent=1 // pred_region
      _
    $region25: #{decode_mlp_forward.1} parent=1 // pred_fallthru
      _
    // Predicated region
    $region26: #{decode_mlp_forward.1} parent=1 // pred_check
      _
    $region27: #{decode_mlp_forward.1} parent=1 // pred_check_branch
      %48 = sbr.rel (0) target = $region29
    $region28: #{decode_mlp_forward.1} parent=1 // pred_region
      %50 = dma.done [#allocation3], 16384
    $region29: #{decode_mlp_forward.1} parent=1 // pred_fallthru
      _
    // Predicated region
    $region30: #{decode_mlp_forward.1} parent=1 // pred_check
      _
    $region31: #{decode_mlp_forward.1} parent=1 // pred_check_branch
      %52 = sbr.rel (0) target = $region33
    $region32: #{decode_mlp_forward.1} parent=1 // pred_region
      %54 = dma.done [#allocation5], 16384
    $region33: #{decode_mlp_forward.1} parent=1 // pred_fallthru
      _
    %v55 = vld [vmem:[%s0] sm:$0xff]
    %v56 = vld [vmem:[%s0 + $0x8] sm:$0xff]
    %v57 = vld [vmem:[%s0 + $0x10] sm:$0xff]
    %v58 = vld [vmem:[%s0 + $0x18] sm:$0xff]
    %v59 = vld [vmem:[#allocation2] sm:$0xff]
    %v60 = vld [vmem:[#allocation2 + $0x8] sm:$0xff]
    %v61 = vld [vmem:[#allocation2 + $0x10] sm:$0xff]
    %v62 = vld [vmem:[#allocation2 + $0x18] sm:$0xff]
    %v63 = vld [vmem:[#allocation2 + $0x20] sm:$0xff]
    %v64 = vld [vmem:[#allocation2 + $0x28] sm:$0xff]
    %v65 = vld [vmem:[#allocation2 + $0x30] sm:$0xff]
    %v66 = vld [vmem:[#allocation2 + $0x38] sm:$0xff]
    %v67 = vld [vmem:[#allocation2 + $0x40] sm:$0xff]
    %v68 = vld [vmem:[#allocation2 + $0x48] sm:$0xff]
    %v69 = vld [vmem:[#allocation2 + $0x50] sm:$0xff]
    %v70 = vld [vmem:[#allocation2 + $0x58] sm:$0xff]
    %v71 = vld [vmem:[#allocation2 + $0x60] sm:$0xff]
    %v72 = vld [vmem:[#allocation2 + $0x68] sm:$0xff]
    %v73 = vld [vmem:[#allocation2 + $0x70] sm:$0xff]
    %v74 = vld [vmem:[#allocation2 + $0x78] sm:$0xff]
    %v75 = vld [vmem:[#allocation2 + $0x80] sm:$0xff]
    %v76 = vld [vmem:[#allocation2 + $0x88] sm:$0xff]
    %v77 = vld [vmem:[#allocation2 + $0x90] sm:$0xff]
    %v78 = vld [vmem:[#allocation2 + $0x98] sm:$0xff]
    %v79 = vld [vmem:[#allocation2 + $0xa0] sm:$0xff]
    %v80 = vld [vmem:[#allocation2 + $0xa8] sm:$0xff]
    %v81 = vld [vmem:[#allocation2 + $0xb0] sm:$0xff]
    %v82 = vld [vmem:[#allocation2 + $0xb8] sm:$0xff]
    %v83 = vld [vmem:[#allocation2 + $0xc0] sm:$0xff]
    %v84 = vld [vmem:[#allocation2 + $0xc8] sm:$0xff]
    %v85 = vld [vmem:[#allocation2 + $0xd0] sm:$0xff]
    %v86 = vld [vmem:[#allocation2 + $0xd8] sm:$0xff]
    %v87 = vld [vmem:[#allocation2 + $0xe0] sm:$0xff]
    %v88 = vld [vmem:[#allocation2 + $0xe8] sm:$0xff]
    %v89 = vld [vmem:[#allocation2 + $0xf0] sm:$0xff]
    %v90 = vld [vmem:[#allocation2 + $0xf8] sm:$0xff]
    %v91 = vld [vmem:[#allocation2 + $0x100] sm:$0xff]
    %v92 = vld [vmem:[#allocation2 + $0x108] sm:$0xff]
    %v93 = vld [vmem:[#allocation2 + $0x110] sm:$0xff]
    %v94 = vld [vmem:[#allocation2 + $0x118] sm:$0xff]
    %v95 = vld [vmem:[#allocation2 + $0x120] sm:$0xff]
    %v96 = vld [vmem:[#allocation2 + $0x128] sm:$0xff]
    %v97 = vld [vmem:[#allocation2 + $0x130] sm:$0xff]
    %v98 = vld [vmem:[#allocation2 + $0x138] sm:$0xff]
    %v99 = vld [vmem:[#allocation2 + $0x140] sm:$0xff]
    %v100 = vld [vmem:[#allocation2 + $0x148] sm:$0xff]
    %v101 = vld [vmem:[#allocation2 + $0x150] sm:$0xff]
    %v102 = vld [vmem:[#allocation2 + $0x158] sm:$0xff]
    %v103 = vld [vmem:[#allocation2 + $0x160] sm:$0xff]
    %v104 = vld [vmem:[#allocation2 + $0x168] sm:$0xff]
    %v105 = vld [vmem:[#allocation2 + $0x170] sm:$0xff]
    %v106 = vld [vmem:[#allocation2 + $0x178] sm:$0xff]
    %v107 = vld [vmem:[#allocation2 + $0x180] sm:$0xff]
    %v108 = vld [vmem:[#allocation2 + $0x188] sm:$0xff]
    %v109 = vld [vmem:[#allocation2 + $0x190] sm:$0xff]
    %v110 = vld [vmem:[#allocation2 + $0x198] sm:$0xff]
    %v111 = vld [vmem:[#allocation2 + $0x1a0] sm:$0xff]
    %v112 = vld [vmem:[#allocation2 + $0x1a8] sm:$0xff]
    %v113 = vld [vmem:[#allocation2 + $0x1b0] sm:$0xff]
    %v114 = vld [vmem:[#allocation2 + $0x1b8] sm:$0xff]
    %v115 = vld [vmem:[#allocation2 + $0x1c0] sm:$0xff]
    %v116 = vld [vmem:[#allocation2 + $0x1c8] sm:$0xff]
    %v117 = vld [vmem:[#allocation2 + $0x1d0] sm:$0xff]
    %v118 = vld [vmem:[#allocation2 + $0x1d8] sm:$0xff]
    %v119 = vld [vmem:[#allocation2 + $0x1e0] sm:$0xff]
    %v120 = vld [vmem:[#allocation2 + $0x1e8] sm:$0xff]
    %v121 = vld [vmem:[#allocation2 + $0x1f0] sm:$0xff]
    %v122 = vld [vmem:[#allocation2 + $0x1f8] sm:$0xff]
    %v123 = vld [vmem:[#allocation2 + $0x200] sm:$0xff]
    %v124 = vld [vmem:[#allocation2 + $0x208] sm:$0xff]
    %v125 = vld [vmem:[#allocation2 + $0x210] sm:$0xff]
    %v126 = vld [vmem:[#allocation2 + $0x218] sm:$0xff]
    %v127 = vld [vmem:[#allocation2 + $0x220] sm:$0xff]
    %v128 = vld [vmem:[#allocation2 + $0x228] sm:$0xff]
    %v129 = vld [vmem:[#allocation2 + $0x230] sm:$0xff]
    %v130 = vld [vmem:[#allocation2 + $0x238] sm:$0xff]
    %v131 = vld [vmem:[#allocation2 + $0x240] sm:$0xff]
    %v132 = vld [vmem:[#allocation2 + $0x248] sm:$0xff]
    %v133 = vld [vmem:[#allocation2 + $0x250] sm:$0xff]
    %v134 = vld [vmem:[#allocation2 + $0x258] sm:$0xff]
    %v135 = vld [vmem:[#allocation2 + $0x260] sm:$0xff]
    %v136 = vld [vmem:[#allocation2 + $0x268] sm:$0xff]
    %v137 = vld [vmem:[#allocation2 + $0x270] sm:$0xff]
    %v138 = vld [vmem:[#allocation2 + $0x278] sm:$0xff]
    %v139 = vld [vmem:[#allocation2 + $0x280] sm:$0xff]
    %v140 = vld [vmem:[#allocation2 + $0x288] sm:$0xff]
    %v141 = vld [vmem:[#allocation2 + $0x290] sm:$0xff]
    %v142 = vld [vmem:[#allocation2 + $0x298] sm:$0xff]
    %v143 = vld [vmem:[#allocation2 + $0x2a0] sm:$0xff]
    %v144 = vld [vmem:[#allocation2 + $0x2a8] sm:$0xff]
    %v145 = vld [vmem:[#allocation2 + $0x2b0] sm:$0xff]
    %v146 = vld [vmem:[#allocation2 + $0x2b8] sm:$0xff]
    %v147 = vld [vmem:[#allocation2 + $0x2c0] sm:$0xff]
    %v148 = vld [vmem:[#allocation2 + $0x2c8] sm:$0xff]
    %v149 = vld [vmem:[#allocation2 + $0x2d0] sm:$0xff]
    %v150 = vld [vmem:[#allocation2 + $0x2d8] sm:$0xff]
    %v151 = vld [vmem:[#allocation2 + $0x2e0] sm:$0xff]
    %v152 = vld [vmem:[#allocation2 + $0x2e8] sm:$0xff]
    %v153 = vld [vmem:[#allocation2 + $0x2f0] sm:$0xff]
    %v154 = vld [vmem:[#allocation2 + $0x2f8] sm:$0xff]
    %v155 = vld [vmem:[#allocation2 + $0x300] sm:$0xff]
    %v156 = vld [vmem:[#allocation2 + $0x308] sm:$0xff]
    %v157 = vld [vmem:[#allocation2 + $0x310] sm:$0xff]
    %v158 = vld [vmem:[#allocation2 + $0x318] sm:$0xff]
    %v159 = vld [vmem:[#allocation2 + $0x320] sm:$0xff]
    %v160 = vld [vmem:[#allocation2 + $0x328] sm:$0xff]
    %v161 = vld [vmem:[#allocation2 + $0x330] sm:$0xff]
    %v162 = vld [vmem:[#allocation2 + $0x338] sm:$0xff]
    %v163 = vld [vmem:[#allocation2 + $0x340] sm:$0xff]
    %v164 = vld [vmem:[#allocation2 + $0x348] sm:$0xff]
    %v165 = vld [vmem:[#allocation2 + $0x350] sm:$0xff]
    %v166 = vld [vmem:[#allocation2 + $0x358] sm:$0xff]
    %v167 = vld [vmem:[#allocation2 + $0x360] sm:$0xff]
    %v168 = vld [vmem:[#allocation2 + $0x368] sm:$0xff]
    %v169 = vld [vmem:[#allocation2 + $0x370] sm:$0xff]
    %v170 = vld [vmem:[#allocation2 + $0x378] sm:$0xff]
    %v171 = vld [vmem:[#allocation2 + $0x380] sm:$0xff]
    %v172 = vld [vmem:[#allocation2 + $0x388] sm:$0xff]
    %v173 = vld [vmem:[#allocation2 + $0x390] sm:$0xff]
    %v174 = vld [vmem:[#allocation2 + $0x398] sm:$0xff]
    %v175 = vld [vmem:[#allocation2 + $0x3a0] sm:$0xff]
    %v176 = vld [vmem:[#allocation2 + $0x3a8] sm:$0xff]
    %v177 = vld [vmem:[#allocation2 + $0x3b0] sm:$0xff]
    %v178 = vld [vmem:[#allocation2 + $0x3b8] sm:$0xff]
    %v179 = vld [vmem:[#allocation2 + $0x3c0] sm:$0xff]
    %v180 = vld [vmem:[#allocation2 + $0x3c8] sm:$0xff]
    %v181 = vld [vmem:[#allocation2 + $0x3d0] sm:$0xff]
    %v182 = vld [vmem:[#allocation2 + $0x3d8] sm:$0xff]
    %v183 = vld [vmem:[#allocation2 + $0x3e0] sm:$0xff]
    %v184 = vld [vmem:[#allocation2 + $0x3e8] sm:$0xff]
    %v185 = vld [vmem:[#allocation2 + $0x3f0] sm:$0xff]
    %v186 = vld [vmem:[#allocation2 + $0x3f8] sm:$0xff]
    %v187 = vld [vmem:[%s5] sm:$0x3]
    %v189 = vperm.slane %v187, 0
    %v190 = vperm.slane %v187, 1
    %v197 = vunpack.c.l.b16 %v55
    %v198 = vunpack.c.h.b16 %v55
    %v199 = vunpack.c.l.b16 %v56
    %v200 = vunpack.c.h.b16 %v56
    %v201 = vunpack.c.l.b16 %v57
    %v202 = vunpack.c.h.b16 %v57
    %v203 = vunpack.c.l.b16 %v58
    %v204 = vunpack.c.h.b16 %v58
    %v205 = vpack.c.b16 %v197, %v197
    %v206 = vpack.c.b16 %v198, %v198
    %v207 = vpack.c.b16 %v199, %v199
    %v208 = vpack.c.b16 %v200, %v200
    %v209 = vpack.c.b16 %v201, %v201
    %v210 = vpack.c.b16 %v202, %v202
    %v211 = vpack.c.b16 %v203, %v203
    %v212 = vpack.c.b16 %v204, %v204
    %v349 = vunpack.c.l.b16 %v59
    %v350 = vunpack.c.h.b16 %v59
    %v351 = vunpack.c.l.b16 %v60
    %v352 = vunpack.c.h.b16 %v60
    %v353 = vunpack.c.l.b16 %v61
    %v354 = vunpack.c.h.b16 %v61
    %v355 = vunpack.c.l.b16 %v62
    %v356 = vunpack.c.h.b16 %v62
    %v357 = vunpack.c.l.b16 %v63
    %v358 = vunpack.c.h.b16 %v63
    %v359 = vunpack.c.l.b16 %v64
    %v360 = vunpack.c.h.b16 %v64
    %v361 = vunpack.c.l.b16 %v65
    %v362 = vunpack.c.h.b16 %v65
    %v363 = vunpack.c.l.b16 %v66
    %v364 = vunpack.c.h.b16 %v66
    %v365 = vunpack.c.l.b16 %v67
    %v366 = vunpack.c.h.b16 %v67
    %v367 = vunpack.c.l.b16 %v68
    %v368 = vunpack.c.h.b16 %v68
    %v369 = vunpack.c.l.b16 %v69
    %v370 = vunpack.c.h.b16 %v69
    %v371 = vunpack.c.l.b16 %v70
    %v372 = vunpack.c.h.b16 %v70
    %v373 = vunpack.c.l.b16 %v71
    %v374 = vunpack.c.h.b16 %v71
    %v375 = vunpack.c.l.b16 %v72
    %v376 = vunpack.c.h.b16 %v72
    %v377 = vunpack.c.l.b16 %v73
    %v378 = vunpack.c.h.b16 %v73
    %v379 = vunpack.c.l.b16 %v74
    %v380 = vunpack.c.h.b16 %v74
    %v381 = vunpack.c.l.b16 %v75
    %v382 = vunpack.c.h.b16 %v75
    %v383 = vunpack.c.l.b16 %v76
    %v384 = vunpack.c.h.b16 %v76
    %v385 = vunpack.c.l.b16 %v77
    %v386 = vunpack.c.h.b16 %v77
    %v387 = vunpack.c.l.b16 %v78
    %v388 = vunpack.c.h.b16 %v78
    %v389 = vunpack.c.l.b16 %v79
    %v390 = vunpack.c.h.b16 %v79
    %v391 = vunpack.c.l.b16 %v80
    %v392 = vunpack.c.h.b16 %v80
    %v393 = vunpack.c.l.b16 %v81
    %v394 = vunpack.c.h.b16 %v81
    %v395 = vunpack.c.l.b16 %v82
    %v396 = vunpack.c.h.b16 %v82
    %v397 = vunpack.c.l.b16 %v83
    %v398 = vunpack.c.h.b16 %v83
    %v399 = vunpack.c.l.b16 %v84
    %v400 = vunpack.c.h.b16 %v84
    %v401 = vunpack.c.l.b16 %v85
    %v402 = vunpack.c.h.b16 %v85
    %v403 = vunpack.c.l.b16 %v86
    %v404 = vunpack.c.h.b16 %v86
    %v405 = vunpack.c.l.b16 %v87
    %v406 = vunpack.c.h.b16 %v87
    %v407 = vunpack.c.l.b16 %v88
    %v408 = vunpack.c.h.b16 %v88
    %v409 = vunpack.c.l.b16 %v89
    %v410 = vunpack.c.h.b16 %v89
    %v411 = vunpack.c.l.b16 %v90
    %v412 = vunpack.c.h.b16 %v90
    %v413 = vunpack.c.l.b16 %v91
    %v414 = vunpack.c.h.b16 %v91
    %v415 = vunpack.c.l.b16 %v92
    %v416 = vunpack.c.h.b16 %v92
    %v417 = vunpack.c.l.b16 %v93
    %v418 = vunpack.c.h.b16 %v93
    %v419 = vunpack.c.l.b16 %v94
    %v420 = vunpack.c.h.b16 %v94
    %v421 = vunpack.c.l.b16 %v95
    %v422 = vunpack.c.h.b16 %v95
    %v423 = vunpack.c.l.b16 %v96
    %v424 = vunpack.c.h.b16 %v96
    %v425 = vunpack.c.l.b16 %v97
    %v426 = vunpack.c.h.b16 %v97
    %v427 = vunpack.c.l.b16 %v98
    %v428 = vunpack.c.h.b16 %v98
    %v429 = vunpack.c.l.b16 %v99
    %v430 = vunpack.c.h.b16 %v99
    %v431 = vunpack.c.l.b16 %v100
    %v432 = vunpack.c.h.b16 %v100
    %v433 = vunpack.c.l.b16 %v101
    %v434 = vunpack.c.h.b16 %v101
    %v435 = vunpack.c.l.b16 %v102
    %v436 = vunpack.c.h.b16 %v102
    %v437 = vunpack.c.l.b16 %v103
    %v438 = vunpack.c.h.b16 %v103
    %v439 = vunpack.c.l.b16 %v104
    %v440 = vunpack.c.h.b16 %v104
    %v441 = vunpack.c.l.b16 %v105
    %v442 = vunpack.c.h.b16 %v105
    %v443 = vunpack.c.l.b16 %v106
    %v444 = vunpack.c.h.b16 %v106
    %v445 = vunpack.c.l.b16 %v107
    %v446 = vunpack.c.h.b16 %v107
    %v447 = vunpack.c.l.b16 %v108
    %v448 = vunpack.c.h.b16 %v108
    %v449 = vunpack.c.l.b16 %v109
    %v450 = vunpack.c.h.b16 %v109
    %v451 = vunpack.c.l.b16 %v110
    %v452 = vunpack.c.h.b16 %v110
    %v453 = vunpack.c.l.b16 %v111
    %v454 = vunpack.c.h.b16 %v111
    %v455 = vunpack.c.l.b16 %v112
    %v456 = vunpack.c.h.b16 %v112
    %v457 = vunpack.c.l.b16 %v113
    %v458 = vunpack.c.h.b16 %v113
    %v459 = vunpack.c.l.b16 %v114
    %v460 = vunpack.c.h.b16 %v114
    %v461 = vunpack.c.l.b16 %v115
    %v462 = vunpack.c.h.b16 %v115
    %v463 = vunpack.c.l.b16 %v116
    %v464 = vunpack.c.h.b16 %v116
    %v465 = vunpack.c.l.b16 %v117
    %v466 = vunpack.c.h.b16 %v117
    %v467 = vunpack.c.l.b16 %v118
    %v468 = vunpack.c.h.b16 %v118
    %v469 = vunpack.c.l.b16 %v119
    %v470 = vunpack.c.h.b16 %v119
    %v471 = vunpack.c.l.b16 %v120
    %v472 = vunpack.c.h.b16 %v120
    %v473 = vunpack.c.l.b16 %v121
    %v474 = vunpack.c.h.b16 %v121
    %v475 = vunpack.c.l.b16 %v122
    %v476 = vunpack.c.h.b16 %v122
    %v477 = vunpack.c.l.b16 %v123
    %v478 = vunpack.c.h.b16 %v123
    %v479 = vunpack.c.l.b16 %v124
    %v480 = vunpack.c.h.b16 %v124
    %v481 = vunpack.c.l.b16 %v125
    %v482 = vunpack.c.h.b16 %v125
    %v483 = vunpack.c.l.b16 %v126
    %v484 = vunpack.c.h.b16 %v126
    %v485 = vunpack.c.l.b16 %v127
    %v486 = vunpack.c.h.b16 %v127
    %v487 = vunpack.c.l.b16 %v128
    %v488 = vunpack.c.h.b16 %v128
    %v489 = vunpack.c.l.b16 %v129
    %v490 = vunpack.c.h.b16 %v129
    %v491 = vunpack.c.l.b16 %v130
    %v492 = vunpack.c.h.b16 %v130
    %v493 = vunpack.c.l.b16 %v131
    %v494 = vunpack.c.h.b16 %v131
    %v495 = vunpack.c.l.b16 %v132
    %v496 = vunpack.c.h.b16 %v132
    %v497 = vunpack.c.l.b16 %v133
    %v498 = vunpack.c.h.b16 %v133
    %v499 = vunpack.c.l.b16 %v134
    %v500 = vunpack.c.h.b16 %v134
    %v501 = vunpack.c.l.b16 %v135
    %v502 = vunpack.c.h.b16 %v135
    %v503 = vunpack.c.l.b16 %v136
    %v504 = vunpack.c.h.b16 %v136
    %v505 = vunpack.c.l.b16 %v137
    %v506 = vunpack.c.h.b16 %v137
    %v507 = vunpack.c.l.b16 %v138
    %v508 = vunpack.c.h.b16 %v138
    %v509 = vunpack.c.l.b16 %v139
    %v510 = vunpack.c.h.b16 %v139
    %v511 = vunpack.c.l.b16 %v140
    %v512 = vunpack.c.h.b16 %v140
    %v513 = vunpack.c.l.b16 %v141
    %v514 = vunpack.c.h.b16 %v141
    %v515 = vunpack.c.l.b16 %v142
    %v516 = vunpack.c.h.b16 %v142
    %v517 = vunpack.c.l.b16 %v143
    %v518 = vunpack.c.h.b16 %v143
    %v519 = vunpack.c.l.b16 %v144
    %v520 = vunpack.c.h.b16 %v144
    %v521 = vunpack.c.l.b16 %v145
    %v522 = vunpack.c.h.b16 %v145
    %v523 = vunpack.c.l.b16 %v146
    %v524 = vunpack.c.h.b16 %v146
    %v525 = vunpack.c.l.b16 %v147
    %v526 = vunpack.c.h.b16 %v147
    %v527 = vunpack.c.l.b16 %v148
    %v528 = vunpack.c.h.b16 %v148
    %v529 = vunpack.c.l.b16 %v149
    %v530 = vunpack.c.h.b16 %v149
    %v531 = vunpack.c.l.b16 %v150
    %v532 = vunpack.c.h.b16 %v150
    %v533 = vunpack.c.l.b16 %v151
    %v534 = vunpack.c.h.b16 %v151
    %v535 = vunpack.c.l.b16 %v152
    %v536 = vunpack.c.h.b16 %v152
    %v537 = vunpack.c.l.b16 %v153
    %v538 = vunpack.c.h.b16 %v153
    %v539 = vunpack.c.l.b16 %v154
    %v540 = vunpack.c.h.b16 %v154
    %v541 = vunpack.c.l.b16 %v155
    %v542 = vunpack.c.h.b16 %v155
    %v543 = vunpack.c.l.b16 %v156
    %v544 = vunpack.c.h.b16 %v156
    %v545 = vunpack.c.l.b16 %v157
    %v546 = vunpack.c.h.b16 %v157
    %v547 = vunpack.c.l.b16 %v158
    %v548 = vunpack.c.h.b16 %v158
    %v549 = vunpack.c.l.b16 %v159
    %v550 = vunpack.c.h.b16 %v159
    %v551 = vunpack.c.l.b16 %v160
    %v552 = vunpack.c.h.b16 %v160
    %v553 = vunpack.c.l.b16 %v161
    %v554 = vunpack.c.h.b16 %v161
    %v555 = vunpack.c.l.b16 %v162
    %v556 = vunpack.c.h.b16 %v162
    %v557 = vunpack.c.l.b16 %v163
    %v558 = vunpack.c.h.b16 %v163
    %v559 = vunpack.c.l.b16 %v164
    %v560 = vunpack.c.h.b16 %v164
    %v561 = vunpack.c.l.b16 %v165
    %v562 = vunpack.c.h.b16 %v165
    %v563 = vunpack.c.l.b16 %v166
    %v564 = vunpack.c.h.b16 %v166
    %v565 = vunpack.c.l.b16 %v167
    %v566 = vunpack.c.h.b16 %v167
    %v567 = vunpack.c.l.b16 %v168
    %v568 = vunpack.c.h.b16 %v168
    %v569 = vunpack.c.l.b16 %v169
    %v570 = vunpack.c.h.b16 %v169
    %v571 = vunpack.c.l.b16 %v170
    %v572 = vunpack.c.h.b16 %v170
    %v573 = vunpack.c.l.b16 %v171
    %v574 = vunpack.c.h.b16 %v171
    %v575 = vunpack.c.l.b16 %v172
    %v576 = vunpack.c.h.b16 %v172
    %v577 = vunpack.c.l.b16 %v173
    %v578 = vunpack.c.h.b16 %v173
    %v579 = vunpack.c.l.b16 %v174
    %v580 = vunpack.c.h.b16 %v174
    %v581 = vunpack.c.l.b16 %v175
    %v582 = vunpack.c.h.b16 %v175
    %v583 = vunpack.c.l.b16 %v176
    %v584 = vunpack.c.h.b16 %v176
    %v585 = vunpack.c.l.b16 %v177
    %v586 = vunpack.c.h.b16 %v177
    %v587 = vunpack.c.l.b16 %v178
    %v588 = vunpack.c.h.b16 %v178
    %v589 = vunpack.c.l.b16 %v179
    %v590 = vunpack.c.h.b16 %v179
    %v591 = vunpack.c.l.b16 %v180
    %v592 = vunpack.c.h.b16 %v180
    %v593 = vunpack.c.l.b16 %v181
    %v594 = vunpack.c.h.b16 %v181
    %v595 = vunpack.c.l.b16 %v182
    %v596 = vunpack.c.h.b16 %v182
    %v597 = vunpack.c.l.b16 %v183
    %v598 = vunpack.c.h.b16 %v183
    %v599 = vunpack.c.l.b16 %v184
    %v600 = vunpack.c.h.b16 %v184
    %v601 = vunpack.c.l.b16 %v185
    %v602 = vunpack.c.h.b16 %v185
    %v603 = vunpack.c.l.b16 %v186
    %v604 = vunpack.c.h.b16 %v186
    %v605 = vpack.c.b16 %v351, %v349
    %v606 = vpack.c.b16 %v352, %v350
    %v607 = vpack.c.b16 %v355, %v353
    %v608 = vpack.c.b16 %v356, %v354
    %v609 = vpack.c.b16 %v359, %v357
    %v610 = vpack.c.b16 %v360, %v358
    %v611 = vpack.c.b16 %v363, %v361
    %v612 = vpack.c.b16 %v364, %v362
    %v613 = vpack.c.b16 %v367, %v365
    %v614 = vpack.c.b16 %v368, %v366
    %v615 = vpack.c.b16 %v371, %v369
    %v616 = vpack.c.b16 %v372, %v370
    %v617 = vpack.c.b16 %v375, %v373
    %v618 = vpack.c.b16 %v376, %v374
    %v619 = vpack.c.b16 %v379, %v377
    %v620 = vpack.c.b16 %v380, %v378
    %v621 = vpack.c.b16 %v383, %v381
    %v622 = vpack.c.b16 %v384, %v382
    %v623 = vpack.c.b16 %v387, %v385
    %v624 = vpack.c.b16 %v388, %v386
    %v625 = vpack.c.b16 %v391, %v389
    %v626 = vpack.c.b16 %v392, %v390
    %v627 = vpack.c.b16 %v395, %v393
    %v628 = vpack.c.b16 %v396, %v394
    %v629 = vpack.c.b16 %v399, %v397
    %v630 = vpack.c.b16 %v400, %v398
    %v631 = vpack.c.b16 %v403, %v401
    %v632 = vpack.c.b16 %v404, %v402
    %v633 = vpack.c.b16 %v407, %v405
    %v634 = vpack.c.b16 %v408, %v406
    %v635 = vpack.c.b16 %v411, %v409
    %v636 = vpack.c.b16 %v412, %v410
    %v637 = vpack.c.b16 %v415, %v413
    %v638 = vpack.c.b16 %v416, %v414
    %v639 = vpack.c.b16 %v419, %v417
    %v640 = vpack.c.b16 %v420, %v418
    %v641 = vpack.c.b16 %v423, %v421
    %v642 = vpack.c.b16 %v424, %v422
    %v643 = vpack.c.b16 %v427, %v425
    %v644 = vpack.c.b16 %v428, %v426
    %v645 = vpack.c.b16 %v431, %v429
    %v646 = vpack.c.b16 %v432, %v430
    %v647 = vpack.c.b16 %v435, %v433
    %v648 = vpack.c.b16 %v436, %v434
    %v649 = vpack.c.b16 %v439, %v437
    %v650 = vpack.c.b16 %v440, %v438
    %v651 = vpack.c.b16 %v443, %v441
    %v652 = vpack.c.b16 %v444, %v442
    %v653 = vpack.c.b16 %v447, %v445
    %v654 = vpack.c.b16 %v448, %v446
    %v655 = vpack.c.b16 %v451, %v449
    %v656 = vpack.c.b16 %v452, %v450
    %v657 = vpack.c.b16 %v455, %v453
    %v658 = vpack.c.b16 %v456, %v454
    %v659 = vpack.c.b16 %v459, %v457
    %v660 = vpack.c.b16 %v460, %v458
    %v661 = vpack.c.b16 %v463, %v461
    %v662 = vpack.c.b16 %v464, %v462
    %v663 = vpack.c.b16 %v467, %v465
    %v664 = vpack.c.b16 %v468, %v466
    %v665 = vpack.c.b16 %v471, %v469
    %v666 = vpack.c.b16 %v472, %v470
    %v667 = vpack.c.b16 %v475, %v473
    %v668 = vpack.c.b16 %v476, %v474
    %v669 = vpack.c.b16 %v479, %v477
    %v670 = vpack.c.b16 %v480, %v478
    %v671 = vpack.c.b16 %v483, %v481
    %v672 = vpack.c.b16 %v484, %v482
    %v673 = vpack.c.b16 %v487, %v485
    %v674 = vpack.c.b16 %v488, %v486
    %v675 = vpack.c.b16 %v491, %v489
    %v676 = vpack.c.b16 %v492, %v490
    %v677 = vpack.c.b16 %v495, %v493
    %v678 = vpack.c.b16 %v496, %v494
    %v679 = vpack.c.b16 %v499, %v497
    %v680 = vpack.c.b16 %v500, %v498
    %v681 = vpack.c.b16 %v503, %v501
    %v682 = vpack.c.b16 %v504, %v502
    %v683 = vpack.c.b16 %v507, %v505
    %v684 = vpack.c.b16 %v508, %v506
    %v685 = vpack.c.b16 %v511, %v509
    %v686 = vpack.c.b16 %v512, %v510
    %v687 = vpack.c.b16 %v515, %v513
    %v688 = vpack.c.b16 %v516, %v514
    %v689 = vpack.c.b16 %v519, %v517
    %v690 = vpack.c.b16 %v520, %v518
    %v691 = vpack.c.b16 %v523, %v521
    %v692 = vpack.c.b16 %v524, %v522
    %v693 = vpack.c.b16 %v527, %v525
    %v694 = vpack.c.b16 %v528, %v526
    %v695 = vpack.c.b16 %v531, %v529
    %v696 = vpack.c.b16 %v532, %v530
    %v697 = vpack.c.b16 %v535, %v533
    %v698 = vpack.c.b16 %v536, %v534
    %v699 = vpack.c.b16 %v539, %v537
    %v700 = vpack.c.b16 %v540, %v538
    %v701 = vpack.c.b16 %v543, %v541
    %v702 = vpack.c.b16 %v544, %v542
    %v703 = vpack.c.b16 %v547, %v545
    %v704 = vpack.c.b16 %v548, %v546
    %v705 = vpack.c.b16 %v551, %v549
    %v706 = vpack.c.b16 %v552, %v550
    %v707 = vpack.c.b16 %v555, %v553
    %v708 = vpack.c.b16 %v556, %v554
    %v709 = vpack.c.b16 %v559, %v557
    %v710 = vpack.c.b16 %v560, %v558
    %v711 = vpack.c.b16 %v563, %v561
    %v712 = vpack.c.b16 %v564, %v562
    %v713 = vpack.c.b16 %v567, %v565
    %v714 = vpack.c.b16 %v568, %v566
    %v715 = vpack.c.b16 %v571, %v569
    %v716 = vpack.c.b16 %v572, %v570
    %v717 = vpack.c.b16 %v575, %v573
    %v718 = vpack.c.b16 %v576, %v574
    %v719 = vpack.c.b16 %v579, %v577
    %v720 = vpack.c.b16 %v580, %v578
    %v721 = vpack.c.b16 %v583, %v581
    %v722 = vpack.c.b16 %v584, %v582
    %v723 = vpack.c.b16 %v587, %v585
    %v724 = vpack.c.b16 %v588, %v586
    %v725 = vpack.c.b16 %v591, %v589
    %v726 = vpack.c.b16 %v592, %v590
    %v727 = vpack.c.b16 %v595, %v593
    %v728 = vpack.c.b16 %v596, %v594
    %v729 = vpack.c.b16 %v599, %v597
    %v730 = vpack.c.b16 %v600, %v598
    %v731 = vpack.c.b16 %v603, %v601
    %v732 = vpack.c.b16 %v604, %v602
    %861 = vmatpush.bf16.msra.mxu0 %v619
    %862 = vmatpush.bf16.msra.mxu0 %v617
    %863 = vmatpush.bf16.msra.mxu0 %v615
    %864 = vmatpush.bf16.msra.mxu0 %v613
    %865 = vmatpush.bf16.msra.mxu0 %v611
    %866 = vmatpush.bf16.msra.mxu0 %v609
    %867 = vmatpush.bf16.msra.mxu0 %v607
    %868 = vmatpush.bf16.msra.mxu0 %v605
    %869 = vmatmul.bf16.gmra.mxu0 %v205
    %v870 = vpop.f32.mrf.mxu0
    %v871 = vadd.f32 %v189, %v870
    %v872 = vpop.f32.mrf.mxu0
    %873 = vdwg.mxu0
    %874 = vmatpush.bf16.msra.mxu0 %v635
    %875 = vmatpush.bf16.msra.mxu0 %v633
    %876 = vmatpush.bf16.msra.mxu0 %v631
    %877 = vmatpush.bf16.msra.mxu0 %v629
    %878 = vmatpush.bf16.msra.mxu0 %v627
    %879 = vmatpush.bf16.msra.mxu0 %v625
    %880 = vmatpush.bf16.msra.mxu0 %v623
    %881 = vmatpush.bf16.msra.mxu0 %v621
    %882 = vmatmul.bf16.gmra.mxu0 %v206
    %v883 = vpop.f32.mrf.mxu0
    %v884 = vadd.f32 %v871, %v883
    %v885 = vpop.f32.mrf.mxu0
    %886 = vdwg.mxu0
    %887 = vmatpush.bf16.msra.mxu0 %v651
    %888 = vmatpush.bf16.msra.mxu0 %v649
    %889 = vmatpush.bf16.msra.mxu0 %v647
    %890 = vmatpush.bf16.msra.mxu0 %v645
    %891 = vmatpush.bf16.msra.mxu0 %v643
    %892 = vmatpush.bf16.msra.mxu0 %v641
    %893 = vmatpush.bf16.msra.mxu0 %v639
    %894 = vmatpush.bf16.msra.mxu0 %v637
    %895 = vmatmul.bf16.gmra.mxu0 %v207
    %v896 = vpop.f32.mrf.mxu0
    %v897 = vadd.f32 %v884, %v896
    %v898 = vpop.f32.mrf.mxu0
    %899 = vdwg.mxu0
    %900 = vmatpush.bf16.msra.mxu0 %v667
    %901 = vmatpush.bf16.msra.mxu0 %v665
    %902 = vmatpush.bf16.msra.mxu0 %v663
    %903 = vmatpush.bf16.msra.mxu0 %v661
    %904 = vmatpush.bf16.msra.mxu0 %v659
    %905 = vmatpush.bf16.msra.mxu0 %v657
    %906 = vmatpush.bf16.msra.mxu0 %v655
    %907 = vmatpush.bf16.msra.mxu0 %v653
    %908 = vmatmul.bf16.gmra.mxu0 %v208
    %v909 = vpop.f32.mrf.mxu0
    %v910 = vadd.f32 %v897, %v909
    %v911 = vpop.f32.mrf.mxu0
    %912 = vdwg.mxu0
    %913 = vmatpush.bf16.msra.mxu0 %v683
    %914 = vmatpush.bf16.msra.mxu0 %v681
    %915 = vmatpush.bf16.msra.mxu0 %v679
    %916 = vmatpush.bf16.msra.mxu0 %v677
    %917 = vmatpush.bf16.msra.mxu0 %v675
    %918 = vmatpush.bf16.msra.mxu0 %v673
    %919 = vmatpush.bf16.msra.mxu0 %v671
    %920 = vmatpush.bf16.msra.mxu0 %v669
    %921 = vmatmul.bf16.gmra.mxu0 %v209
    %v922 = vpop.f32.mrf.mxu0
    %v923 = vadd.f32 %v910, %v922
    %v924 = vpop.f32.mrf.mxu0
    %925 = vdwg.mxu0
    %926 = vmatpush.bf16.msra.mxu0 %v699
    %927 = vmatpush.bf16.msra.mxu0 %v697
    %928 = vmatpush.bf16.msra.mxu0 %v695
    %929 = vmatpush.bf16.msra.mxu0 %v693
    %930 = vmatpush.bf16.msra.mxu0 %v691
    %931 = vmatpush.bf16.msra.mxu0 %v689
    %932 = vmatpush.bf16.msra.mxu0 %v687
    %933 = vmatpush.bf16.msra.mxu0 %v685
    %934 = vmatmul.bf16.gmra.mxu0 %v210
    %v935 = vpop.f32.mrf.mxu0
    %v936 = vadd.f32 %v923, %v935
    %v937 = vpop.f32.mrf.mxu0
    %938 = vdwg.mxu0
    %939 = vmatpush.bf16.msra.mxu0 %v715
    %940 = vmatpush.bf16.msra.mxu0 %v713
    %941 = vmatpush.bf16.msra.mxu0 %v711
    %942 = vmatpush.bf16.msra.mxu0 %v709
    %943 = vmatpush.bf16.msra.mxu0 %v707
    %944 = vmatpush.bf16.msra.mxu0 %v705
    %945 = vmatpush.bf16.msra.mxu0 %v703
    %946 = vmatpush.bf16.msra.mxu0 %v701
    %947 = vmatmul.bf16.gmra.mxu0 %v211
    %v948 = vpop.f32.mrf.mxu0
    %v949 = vadd.f32 %v936, %v948
    %v950 = vpop.f32.mrf.mxu0
    %951 = vdwg.mxu0
    %952 = vmatpush.bf16.msra.mxu0 %v731
    %953 = vmatpush.bf16.msra.mxu0 %v729
    %954 = vmatpush.bf16.msra.mxu0 %v727
    %955 = vmatpush.bf16.msra.mxu0 %v725
    %956 = vmatpush.bf16.msra.mxu0 %v723
    %957 = vmatpush.bf16.msra.mxu0 %v721
    %958 = vmatpush.bf16.msra.mxu0 %v719
    %959 = vmatpush.bf16.msra.mxu0 %v717
    %960 = vmatmul.bf16.gmra.mxu0 %v212
    %v961 = vpop.f32.mrf.mxu0
    %v962 = vadd.f32 %v949, %v961
    %v963 = vpop.f32.mrf.mxu0
    %964 = vdwg.mxu0
    %965 = vmatpush.bf16.msra.mxu0 %v620
    %966 = vmatpush.bf16.msra.mxu0 %v618
    %967 = vmatpush.bf16.msra.mxu0 %v616
    %968 = vmatpush.bf16.msra.mxu0 %v614
    %969 = vmatpush.bf16.msra.mxu0 %v612
    %970 = vmatpush.bf16.msra.mxu0 %v610
    %971 = vmatpush.bf16.msra.mxu0 %v608
    %972 = vmatpush.bf16.msra.mxu0 %v606
    %973 = vmatmul.bf16.gmra.mxu0 %v205
    %v974 = vpop.f32.mrf.mxu0
    %v975 = vadd.f32 %v190, %v974
    %v976 = vpop.f32.mrf.mxu0
    %977 = vdwg.mxu0
    %978 = vmatpush.bf16.msra.mxu0 %v636
    %979 = vmatpush.bf16.msra.mxu0 %v634
    %980 = vmatpush.bf16.msra.mxu0 %v632
    %981 = vmatpush.bf16.msra.mxu0 %v630
    %982 = vmatpush.bf16.msra.mxu0 %v628
    %983 = vmatpush.bf16.msra.mxu0 %v626
    %984 = vmatpush.bf16.msra.mxu0 %v624
    %985 = vmatpush.bf16.msra.mxu0 %v622
    %986 = vmatmul.bf16.gmra.mxu0 %v206
    %v987 = vpop.f32.mrf.mxu0
    %v988 = vadd.f32 %v975, %v987
    %v989 = vpop.f32.mrf.mxu0
    %990 = vdwg.mxu0
    %991 = vmatpush.bf16.msra.mxu0 %v652
    %992 = vmatpush.bf16.msra.mxu0 %v650
    %993 = vmatpush.bf16.msra.mxu0 %v648
    %994 = vmatpush.bf16.msra.mxu0 %v646
    %995 = vmatpush.bf16.msra.mxu0 %v644
    %996 = vmatpush.bf16.msra.mxu0 %v642
    %997 = vmatpush.bf16.msra.mxu0 %v640
    %998 = vmatpush.bf16.msra.mxu0 %v638
    %999 = vmatmul.bf16.gmra.mxu0 %v207
    %v1000 = vpop.f32.mrf.mxu0
    %v1001 = vadd.f32 %v988, %v1000
    %v1002 = vpop.f32.mrf.mxu0
    %1003 = vdwg.mxu0
    %1004 = vmatpush.bf16.msra.mxu0 %v668
    %1005 = vmatpush.bf16.msra.mxu0 %v666
    %1006 = vmatpush.bf16.msra.mxu0 %v664
    %1007 = vmatpush.bf16.msra.mxu0 %v662
    %1008 = vmatpush.bf16.msra.mxu0 %v660
    %1009 = vmatpush.bf16.msra.mxu0 %v658
    %1010 = vmatpush.bf16.msra.mxu0 %v656
    %1011 = vmatpush.bf16.msra.mxu0 %v654
    %1012 = vmatmul.bf16.gmra.mxu0 %v208
    %v1013 = vpop.f32.mrf.mxu0
    %v1014 = vadd.f32 %v1001, %v1013
    %v1015 = vpop.f32.mrf.mxu0
    %1016 = vdwg.mxu0
    %1017 = vmatpush.bf16.msra.mxu0 %v684
    %1018 = vmatpush.bf16.msra.mxu0 %v682
    %1019 = vmatpush.bf16.msra.mxu0 %v680
    %1020 = vmatpush.bf16.msra.mxu0 %v678
    %1021 = vmatpush.bf16.msra.mxu0 %v676
    %1022 = vmatpush.bf16.msra.mxu0 %v674
    %1023 = vmatpush.bf16.msra.mxu0 %v672
    %1024 = vmatpush.bf16.msra.mxu0 %v670
    %1025 = vmatmul.bf16.gmra.mxu0 %v209
    %v1026 = vpop.f32.mrf.mxu0
    %v1027 = vadd.f32 %v1014, %v1026
    %v1028 = vpop.f32.mrf.mxu0
    %1029 = vdwg.mxu0
    %1030 = vmatpush.bf16.msra.mxu0 %v700
    %1031 = vmatpush.bf16.msra.mxu0 %v698
    %1032 = vmatpush.bf16.msra.mxu0 %v696
    %1033 = vmatpush.bf16.msra.mxu0 %v694
    %1034 = vmatpush.bf16.msra.mxu0 %v692
    %1035 = vmatpush.bf16.msra.mxu0 %v690
    %1036 = vmatpush.bf16.msra.mxu0 %v688
    %1037 = vmatpush.bf16.msra.mxu0 %v686
    %1038 = vmatmul.bf16.gmra.mxu0 %v210
    %v1039 = vpop.f32.mrf.mxu0
    %v1040 = vadd.f32 %v1027, %v1039
    %v1041 = vpop.f32.mrf.mxu0
    %1042 = vdwg.mxu0
    %1043 = vmatpush.bf16.msra.mxu0 %v716
    %1044 = vmatpush.bf16.msra.mxu0 %v714
    %1045 = vmatpush.bf16.msra.mxu0 %v712
    %1046 = vmatpush.bf16.msra.mxu0 %v710
    %1047 = vmatpush.bf16.msra.mxu0 %v708
    %1048 = vmatpush.bf16.msra.mxu0 %v706
    %1049 = vmatpush.bf16.msra.mxu0 %v704
    %1050 = vmatpush.bf16.msra.mxu0 %v702
    %1051 = vmatmul.bf16.gmra.mxu0 %v211
    %v1052 = vpop.f32.mrf.mxu0
    %v1053 = vadd.f32 %v1040, %v1052
    %v1054 = vpop.f32.mrf.mxu0
    %1055 = vdwg.mxu0
    %1056 = vmatpush.bf16.msra.mxu0 %v732
    %1057 = vmatpush.bf16.msra.mxu0 %v730
    %1058 = vmatpush.bf16.msra.mxu0 %v728
    %1059 = vmatpush.bf16.msra.mxu0 %v726
    %1060 = vmatpush.bf16.msra.mxu0 %v724
    %1061 = vmatpush.bf16.msra.mxu0 %v722
    %1062 = vmatpush.bf16.msra.mxu0 %v720
    %1063 = vmatpush.bf16.msra.mxu0 %v718
    %1064 = vmatmul.bf16.gmra.mxu0 %v212
    %v1065 = vpop.f32.mrf.mxu0
    %v1066 = vadd.f32 %v1053, %v1065
    %v1067 = vpop.f32.mrf.mxu0
    %1068 = vdwg.mxu0
    %v1069 = vxor.u32 %v1066, 2147483648
    %v1070 = vmul.f32 %v1069, 1.442695
    %v1071 = vpow.pop %v1070
    %v1072 = vadd.f32 %v1071, 1.0
    %v1073 = vrcp.pop %v1072
    %v1074 = vmul.f32 %v1072, %v1073
    %v1075 = vsub.f32 1.0, %v1074
    %v1076 = vmul.f32 %v1073, %v1075
    %v1077 = vadd.f32 %v1073, %v1076
    %vm1078 = vweird.f32 %v1072
    %vm1079 = vweird.f32 %v1073
    %vm1080 = vmor %vm1078, %vm1079
    %v1081 = vsel %vm1080, %v1073, %v1077
    %v1082 = vand.u32 2147483647, %v1072
    %vm1083 = vcmp.eq.f32.partialorder %v1082, 8.507059e+37
    %v1084 = vand.u32 %v1072, 2147483648
    %v1085 = vor.u32 1.1754944e-38, %v1084
    %v1086 = vsel %vm1083, %v1085, %v1081
    %v1087 = vmul.f32 1.0, %v1086
    %v1088 = vmul.f32 %v962, %v1087
    %v1089 = vld [vmem:[%s5 + $0x2] sm:$0x1]
    %v1091 = vperm.slane %v1089, 0
    %v1093 = vadd.f32 %v1088, %v1091
    %v1094 = vmax.f32 %v1093, 0.0
    %v1095 = vpack.c.bf16 %v1094, %v1094
    %v1096 = vld [vmem:[%s2] sm:$0xff]
    %v1097 = vld [vmem:[%s2 + $0x8] sm:$0xff]
    %v1098 = vld [vmem:[%s2 + $0x10] sm:$0xff]
    %v1099 = vld [vmem:[%s2 + $0x18] sm:$0xff]
    %v1100 = vld [vmem:[%s2 + $0x20] sm:$0xff]
    %v1101 = vld [vmem:[%s2 + $0x28] sm:$0xff]
    %v1102 = vld [vmem:[%s2 + $0x30] sm:$0xff]
    %v1103 = vld [vmem:[%s2 + $0x38] sm:$0xff]
    %v1104 = vld [vmem:[%s2 + $0x40] sm:$0xff]
    %v1105 = vld [vmem:[%s2 + $0x48] sm:$0xff]
    %v1106 = vld [vmem:[%s2 + $0x50] sm:$0xff]
    %v1107 = vld [vmem:[%s2 + $0x58] sm:$0xff]
    %v1108 = vld [vmem:[%s2 + $0x60] sm:$0xff]
    %v1109 = vld [vmem:[%s2 + $0x68] sm:$0xff]
    %v1110 = vld [vmem:[%s2 + $0x70] sm:$0xff]
    %v1111 = vld [vmem:[%s2 + $0x78] sm:$0xff]
    %v1112 = vld [vmem:[%s5 + $0x3] sm:$0x3]
    %v1114 = vperm.slane %v1112, 0
    %v1115 = vperm.slane %v1112, 1
    %v1134 = vunpack.c.l.b16 %v1096
    %v1135 = vunpack.c.h.b16 %v1096
    %v1136 = vunpack.c.l.b16 %v1097
    %v1137 = vunpack.c.h.b16 %v1097
    %v1138 = vunpack.c.l.b16 %v1098
    %v1139 = vunpack.c.h.b16 %v1098
    %v1140 = vunpack.c.l.b16 %v1099
    %v1141 = vunpack.c.h.b16 %v1099
    %v1142 = vunpack.c.l.b16 %v1100
    %v1143 = vunpack.c.h.b16 %v1100
    %v1144 = vunpack.c.l.b16 %v1101
    %v1145 = vunpack.c.h.b16 %v1101
    %v1146 = vunpack.c.l.b16 %v1102
    %v1147 = vunpack.c.h.b16 %v1102
    %v1148 = vunpack.c.l.b16 %v1103
    %v1149 = vunpack.c.h.b16 %v1103
    %v1150 = vunpack.c.l.b16 %v1104
    %v1151 = vunpack.c.h.b16 %v1104
    %v1152 = vunpack.c.l.b16 %v1105
    %v1153 = vunpack.c.h.b16 %v1105
    %v1154 = vunpack.c.l.b16 %v1106
    %v1155 = vunpack.c.h.b16 %v1106
    %v1156 = vunpack.c.l.b16 %v1107
    %v1157 = vunpack.c.h.b16 %v1107
    %v1158 = vunpack.c.l.b16 %v1108
    %v1159 = vunpack.c.h.b16 %v1108
    %v1160 = vunpack.c.l.b16 %v1109
    %v1161 = vunpack.c.h.b16 %v1109
    %v1162 = vunpack.c.l.b16 %v1110
    %v1163 = vunpack.c.h.b16 %v1110
    %v1164 = vunpack.c.l.b16 %v1111
    %v1165 = vunpack.c.h.b16 %v1111
    %v1166 = vpack.c.b16 %v1136, %v1134
    %v1167 = vpack.c.b16 %v1137, %v1135
    %v1168 = vpack.c.b16 %v1140, %v1138
    %v1169 = vpack.c.b16 %v1141, %v1139
    %v1170 = vpack.c.b16 %v1144, %v1142
    %v1171 = vpack.c.b16 %v1145, %v1143
    %v1172 = vpack.c.b16 %v1148, %v1146
    %v1173 = vpack.c.b16 %v1149, %v1147
    %v1174 = vpack.c.b16 %v1152, %v1150
    %v1175 = vpack.c.b16 %v1153, %v1151
    %v1176 = vpack.c.b16 %v1156, %v1154
    %v1177 = vpack.c.b16 %v1157, %v1155
    %v1178 = vpack.c.b16 %v1160, %v1158
    %v1179 = vpack.c.b16 %v1161, %v1159
    %v1180 = vpack.c.b16 %v1164, %v1162
    %v1181 = vpack.c.b16 %v1165, %v1163
    %1198 = vmatpush.bf16.msra.mxu0 %v1180
    %1199 = vmatpush.bf16.msra.mxu0 %v1178
    %1200 = vmatpush.bf16.msra.mxu0 %v1176
    %1201 = vmatpush.bf16.msra.mxu0 %v1174
    %1202 = vmatpush.bf16.msra.mxu0 %v1172
    %1203 = vmatpush.bf16.msra.mxu0 %v1170
    %1204 = vmatpush.bf16.msra.mxu0 %v1168
    %1205 = vmatpush.bf16.msra.mxu0 %v1166
    %1206 = vmatmul.bf16.gmra.mxu0 %v1095
    %v1207 = vpop.f32.mrf.mxu0
    %v1208 = vadd.f32 %v1114, %v1207
    %v1209 = vpop.f32.mrf.mxu0
    %1210 = vdwg.mxu0
    %1211 = vmatpush.bf16.msra.mxu0 %v1181
    %1212 = vmatpush.bf16.msra.mxu0 %v1179
    %1213 = vmatpush.bf16.msra.mxu0 %v1177
    %1214 = vmatpush.bf16.msra.mxu0 %v1175
    %1215 = vmatpush.bf16.msra.mxu0 %v1173
    %1216 = vmatpush.bf16.msra.mxu0 %v1171
    %1217 = vmatpush.bf16.msra.mxu0 %v1169
    %1218 = vmatpush.bf16.msra.mxu0 %v1167
    %1219 = vmatmul.bf16.gmra.mxu0 %v1095
    %v1220 = vpop.f32.mrf.mxu0
    %v1221 = vadd.f32 %v1115, %v1220
    %v1222 = vpop.f32.mrf.mxu0
    %1223 = vdwg.mxu0
    %v1224 = vxor.u32 %v1221, 2147483648
    %v1225 = vmul.f32 %v1224, 1.442695
    %v1226 = vpow.pop %v1225
    %v1227 = vadd.f32 %v1226, 1.0
    %v1228 = vrcp.pop %v1227
    %v1229 = vmul.f32 %v1227, %v1228
    %v1230 = vsub.f32 1.0, %v1229
    %v1231 = vmul.f32 %v1228, %v1230
    %v1232 = vadd.f32 %v1228, %v1231
    %vm1233 = vweird.f32 %v1227
    %vm1234 = vweird.f32 %v1228
    %vm1235 = vmor %vm1233, %vm1234
    %v1236 = vsel %vm1235, %v1228, %v1232
    %v1237 = vand.u32 2147483647, %v1227
    %vm1238 = vcmp.eq.f32.partialorder %v1237, 8.507059e+37
    %v1239 = vand.u32 %v1227, 2147483648
    %v1240 = vor.u32 1.1754944e-38, %v1239
    %v1241 = vsel %vm1238, %v1240, %v1236
    %v1242 = vmul.f32 1.0, %v1241
    %v1243 = vmul.f32 %v1208, %v1242
    %v1244 = vld [vmem:[%s5 + $0x5] sm:$0x1]
    %v1246 = vperm.slane %v1244, 0
    %v1248 = vadd.f32 %v1243, %v1246
    %v1249 = vmax.f32 %v1248, 0.0
    %v1250 = vpack.c.bf16 %v1249, %v1249
    %v1251 = vld [vmem:[%s3] sm:$0xff]
    %v1252 = vld [vmem:[%s3 + $0x8] sm:$0xff]
    %v1253 = vld [vmem:[%s3 + $0x10] sm:$0xff]
    %v1254 = vld [vmem:[%s3 + $0x18] sm:$0xff]
    %v1255 = vld [vmem:[%s3 + $0x20] sm:$0xff]
    %v1256 = vld [vmem:[%s3 + $0x28] sm:$0xff]
    %v1257 = vld [vmem:[%s3 + $0x30] sm:$0xff]
    %v1258 = vld [vmem:[%s3 + $0x38] sm:$0xff]
    %v1259 = vld [vmem:[%s3 + $0x40] sm:$0xff]
    %v1260 = vld [vmem:[%s3 + $0x48] sm:$0xff]
    %v1261 = vld [vmem:[%s3 + $0x50] sm:$0xff]
    %v1262 = vld [vmem:[%s3 + $0x58] sm:$0xff]
    %v1263 = vld [vmem:[%s3 + $0x60] sm:$0xff]
    %v1264 = vld [vmem:[%s3 + $0x68] sm:$0xff]
    %v1265 = vld [vmem:[%s3 + $0x70] sm:$0xff]
    %v1266 = vld [vmem:[%s3 + $0x78] sm:$0xff]
    %v1267 = vld [vmem:[%s5 + $0x6] sm:$0x3]
    %v1269 = vperm.slane %v1267, 0
    %v1270 = vperm.slane %v1267, 1
    %v1289 = vunpack.c.l.b16 %v1251
    %v1290 = vunpack.c.h.b16 %v1251
    %v1291 = vunpack.c.l.b16 %v1252
    %v1292 = vunpack.c.h.b16 %v1252
    %v1293 = vunpack.c.l.b16 %v1253
    %v1294 = vunpack.c.h.b16 %v1253
    %v1295 = vunpack.c.l.b16 %v1254
    %v1296 = vunpack.c.h.b16 %v1254
    %v1297 = vunpack.c.l.b16 %v1255
    %v1298 = vunpack.c.h.b16 %v1255
    %v1299 = vunpack.c.l.b16 %v1256
    %v1300 = vunpack.c.h.b16 %v1256
    %v1301 = vunpack.c.l.b16 %v1257
    %v1302 = vunpack.c.h.b16 %v1257
    %v1303 = vunpack.c.l.b16 %v1258
    %v1304 = vunpack.c.h.b16 %v1258
    %v1305 = vunpack.c.l.b16 %v1259
    %v1306 = vunpack.c.h.b16 %v1259
    %v1307 = vunpack.c.l.b16 %v1260
    %v1308 = vunpack.c.h.b16 %v1260
    %v1309 = vunpack.c.l.b16 %v1261
    %v1310 = vunpack.c.h.b16 %v1261
    %v1311 = vunpack.c.l.b16 %v1262
    %v1312 = vunpack.c.h.b16 %v1262
    %v1313 = vunpack.c.l.b16 %v1263
    %v1314 = vunpack.c.h.b16 %v1263
    %v1315 = vunpack.c.l.b16 %v1264
    %v1316 = vunpack.c.h.b16 %v1264
    %v1317 = vunpack.c.l.b16 %v1265
    %v1318 = vunpack.c.h.b16 %v1265
    %v1319 = vunpack.c.l.b16 %v1266
    %v1320 = vunpack.c.h.b16 %v1266
    %v1321 = vpack.c.b16 %v1291, %v1289
    %v1322 = vpack.c.b16 %v1292, %v1290
    %v1323 = vpack.c.b16 %v1295, %v1293
    %v1324 = vpack.c.b16 %v1296, %v1294
    %v1325 = vpack.c.b16 %v1299, %v1297
    %v1326 = vpack.c.b16 %v1300, %v1298
    %v1327 = vpack.c.b16 %v1303, %v1301
    %v1328 = vpack.c.b16 %v1304, %v1302
    %v1329 = vpack.c.b16 %v1307, %v1305
    %v1330 = vpack.c.b16 %v1308, %v1306
    %v1331 = vpack.c.b16 %v1311, %v1309
    %v1332 = vpack.c.b16 %v1312, %v1310
    %v1333 = vpack.c.b16 %v1315, %v1313
    %v1334 = vpack.c.b16 %v1316, %v1314
    %v1335 = vpack.c.b16 %v1319, %v1317
    %v1336 = vpack.c.b16 %v1320, %v1318
    %1353 = vmatpush.bf16.msra.mxu0 %v1335
    %1354 = vmatpush.bf16.msra.mxu0 %v1333
    %1355 = vmatpush.bf16.msra.mxu0 %v1331
    %1356 = vmatpush.bf16.msra.mxu0 %v1329
    %1357 = vmatpush.bf16.msra.mxu0 %v1327
    %1358 = vmatpush.bf16.msra.mxu0 %v1325
    %1359 = vmatpush.bf16.msra.mxu0 %v1323
    %1360 = vmatpush.bf16.msra.mxu0 %v1321
    %1361 = vmatmul.bf16.gmra.mxu0 %v1250
    %v1362 = vpop.f32.mrf.mxu0
    %v1363 = vadd.f32 %v1269, %v1362
    %v1364 = vpop.f32.mrf.mxu0
    %1365 = vdwg.mxu0
    %1366 = vmatpush.bf16.msra.mxu0 %v1336
    %1367 = vmatpush.bf16.msra.mxu0 %v1334
    %1368 = vmatpush.bf16.msra.mxu0 %v1332
    %1369 = vmatpush.bf16.msra.mxu0 %v1330
    %1370 = vmatpush.bf16.msra.mxu0 %v1328
    %1371 = vmatpush.bf16.msra.mxu0 %v1326
    %1372 = vmatpush.bf16.msra.mxu0 %v1324
    %1373 = vmatpush.bf16.msra.mxu0 %v1322
    %1374 = vmatmul.bf16.gmra.mxu0 %v1250
    %v1375 = vpop.f32.mrf.mxu0
    %v1376 = vadd.f32 %v1270, %v1375
    %v1377 = vpop.f32.mrf.mxu0
    %1378 = vdwg.mxu0
    %v1379 = vxor.u32 %v1376, 2147483648
    %v1380 = vmul.f32 %v1379, 1.442695
    %v1381 = vpow.pop %v1380
    %v1382 = vadd.f32 %v1381, 1.0
    %v1383 = vrcp.pop %v1382
    %v1384 = vmul.f32 %v1382, %v1383
    %v1385 = vsub.f32 1.0, %v1384
    %v1386 = vmul.f32 %v1383, %v1385
    %v1387 = vadd.f32 %v1383, %v1386
    %vm1388 = vweird.f32 %v1382
    %vm1389 = vweird.f32 %v1383
    %vm1390 = vmor %vm1388, %vm1389
    %v1391 = vsel %vm1390, %v1383, %v1387
    %v1392 = vand.u32 2147483647, %v1382
    %vm1393 = vcmp.eq.f32.partialorder %v1392, 8.507059e+37
    %v1394 = vand.u32 %v1382, 2147483648
    %v1395 = vor.u32 1.1754944e-38, %v1394
    %v1396 = vsel %vm1393, %v1395, %v1391
    %v1397 = vmul.f32 1.0, %v1396
    %v1398 = vmul.f32 %v1363, %v1397
    %v1399 = vld [vmem:[%s5 + $0x8] sm:$0x1]
    %v1401 = vperm.slane %v1399, 0
    %v1403 = vadd.f32 %v1398, %v1401
    %v1404 = vmax.f32 %v1403, 0.0
    %v1405 = vpack.c.bf16 %v1404, %v1404
    %v1406 = vld [vmem:[#allocation4] sm:$0xff]
    %v1407 = vld [vmem:[#allocation4 + $0x8] sm:$0xff]
    %v1408 = vld [vmem:[#allocation4 + $0x10] sm:$0xff]
    %v1409 = vld [vmem:[#allocation4 + $0x18] sm:$0xff]
    %v1410 = vld [vmem:[#allocation4 + $0x20] sm:$0xff]
    %v1411 = vld [vmem:[#allocation4 + $0x28] sm:$0xff]
    %v1412 = vld [vmem:[#allocation4 + $0x30] sm:$0xff]
    %v1413 = vld [vmem:[#allocation4 + $0x38] sm:$0xff]
    %v1414 = vld [vmem:[#allocation4 + $0x40] sm:$0xff]
    %v1415 = vld [vmem:[#allocation4 + $0x48] sm:$0xff]
    %v1416 = vld [vmem:[#allocation4 + $0x50] sm:$0xff]
    %v1417 = vld [vmem:[#allocation4 + $0x58] sm:$0xff]
    %v1418 = vld [vmem:[#allocation4 + $0x60] sm:$0xff]
    %v1419 = vld [vmem:[#allocation4 + $0x68] sm:$0xff]
    %v1420 = vld [vmem:[#allocation4 + $0x70] sm:$0xff]
    %v1421 = vld [vmem:[#allocation4 + $0x78] sm:$0xff]
    %v1422 = vld [vmem:[#allocation4 + $0x80] sm:$0xff]
    %v1423 = vld [vmem:[#allocation4 + $0x88] sm:$0xff]
    %v1424 = vld [vmem:[#allocation4 + $0x90] sm:$0xff]
    %v1425 = vld [vmem:[#allocation4 + $0x98] sm:$0xff]
    %v1426 = vld [vmem:[#allocation4 + $0xa0] sm:$0xff]
    %v1427 = vld [vmem:[#allocation4 + $0xa8] sm:$0xff]
    %v1428 = vld [vmem:[#allocation4 + $0xb0] sm:$0xff]
    %v1429 = vld [vmem:[#allocation4 + $0xb8] sm:$0xff]
    %v1430 = vld [vmem:[#allocation4 + $0xc0] sm:$0xff]
    %v1431 = vld [vmem:[#allocation4 + $0xc8] sm:$0xff]
    %v1432 = vld [vmem:[#allocation4 + $0xd0] sm:$0xff]
    %v1433 = vld [vmem:[#allocation4 + $0xd8] sm:$0xff]
    %v1434 = vld [vmem:[#allocation4 + $0xe0] sm:$0xff]
    %v1435 = vld [vmem:[#allocation4 + $0xe8] sm:$0xff]
    %v1436 = vld [vmem:[#allocation4 + $0xf0] sm:$0xff]
    %v1437 = vld [vmem:[#allocation4 + $0xf8] sm:$0xff]
    %v1438 = vld [vmem:[#allocation4 + $0x100] sm:$0xff]
    %v1439 = vld [vmem:[#allocation4 + $0x108] sm:$0xff]
    %v1440 = vld [vmem:[#allocation4 + $0x110] sm:$0xff]
    %v1441 = vld [vmem:[#allocation4 + $0x118] sm:$0xff]
    %v1442 = vld [vmem:[#allocation4 + $0x120] sm:$0xff]
    %v1443 = vld [vmem:[#allocation4 + $0x128] sm:$0xff]
    %v1444 = vld [vmem:[#allocation4 + $0x130] sm:$0xff]
    %v1445 = vld [vmem:[#allocation4 + $0x138] sm:$0xff]
    %v1446 = vld [vmem:[#allocation4 + $0x140] sm:$0xff]
    %v1447 = vld [vmem:[#allocation4 + $0x148] sm:$0xff]
    %v1448 = vld [vmem:[#allocation4 + $0x150] sm:$0xff]
    %v1449 = vld [vmem:[#allocation4 + $0x158] sm:$0xff]
    %v1450 = vld [vmem:[#allocation4 + $0x160] sm:$0xff]
    %v1451 = vld [vmem:[#allocation4 + $0x168] sm:$0xff]
    %v1452 = vld [vmem:[#allocation4 + $0x170] sm:$0xff]
    %v1453 = vld [vmem:[#allocation4 + $0x178] sm:$0xff]
    %v1454 = vld [vmem:[#allocation4 + $0x180] sm:$0xff]
    %v1455 = vld [vmem:[#allocation4 + $0x188] sm:$0xff]
    %v1456 = vld [vmem:[#allocation4 + $0x190] sm:$0xff]
    %v1457 = vld [vmem:[#allocation4 + $0x198] sm:$0xff]
    %v1458 = vld [vmem:[#allocation4 + $0x1a0] sm:$0xff]
    %v1459 = vld [vmem:[#allocation4 + $0x1a8] sm:$0xff]
    %v1460 = vld [vmem:[#allocation4 + $0x1b0] sm:$0xff]
    %v1461 = vld [vmem:[#allocation4 + $0x1b8] sm:$0xff]
    %v1462 = vld [vmem:[#allocation4 + $0x1c0] sm:$0xff]
    %v1463 = vld [vmem:[#allocation4 + $0x1c8] sm:$0xff]
    %v1464 = vld [vmem:[#allocation4 + $0x1d0] sm:$0xff]
    %v1465 = vld [vmem:[#allocation4 + $0x1d8] sm:$0xff]
    %v1466 = vld [vmem:[#allocation4 + $0x1e0] sm:$0xff]
    %v1467 = vld [vmem:[#allocation4 + $0x1e8] sm:$0xff]
    %v1468 = vld [vmem:[#allocation4 + $0x1f0] sm:$0xff]
    %v1469 = vld [vmem:[#allocation4 + $0x1f8] sm:$0xff]
    %v1470 = vld [vmem:[#allocation4 + $0x200] sm:$0xff]
    %v1471 = vld [vmem:[#allocation4 + $0x208] sm:$0xff]
    %v1472 = vld [vmem:[#allocation4 + $0x210] sm:$0xff]
    %v1473 = vld [vmem:[#allocation4 + $0x218] sm:$0xff]
    %v1474 = vld [vmem:[#allocation4 + $0x220] sm:$0xff]
    %v1475 = vld [vmem:[#allocation4 + $0x228] sm:$0xff]
    %v1476 = vld [vmem:[#allocation4 + $0x230] sm:$0xff]
    %v1477 = vld [vmem:[#allocation4 + $0x238] sm:$0xff]
    %v1478 = vld [vmem:[#allocation4 + $0x240] sm:$0xff]
    %v1479 = vld [vmem:[#allocation4 + $0x248] sm:$0xff]
    %v1480 = vld [vmem:[#allocation4 + $0x250] sm:$0xff]
    %v1481 = vld [vmem:[#allocation4 + $0x258] sm:$0xff]
    %v1482 = vld [vmem:[#allocation4 + $0x260] sm:$0xff]
    %v1483 = vld [vmem:[#allocation4 + $0x268] sm:$0xff]
    %v1484 = vld [vmem:[#allocation4 + $0x270] sm:$0xff]
    %v1485 = vld [vmem:[#allocation4 + $0x278] sm:$0xff]
    %v1486 = vld [vmem:[#allocation4 + $0x280] sm:$0xff]
    %v1487 = vld [vmem:[#allocation4 + $0x288] sm:$0xff]
    %v1488 = vld [vmem:[#allocation4 + $0x290] sm:$0xff]
    %v1489 = vld [vmem:[#allocation4 + $0x298] sm:$0xff]
    %v1490 = vld [vmem:[#allocation4 + $0x2a0] sm:$0xff]
    %v1491 = vld [vmem:[#allocation4 + $0x2a8] sm:$0xff]
    %v1492 = vld [vmem:[#allocation4 + $0x2b0] sm:$0xff]
    %v1493 = vld [vmem:[#allocation4 + $0x2b8] sm:$0xff]
    %v1494 = vld [vmem:[#allocation4 + $0x2c0] sm:$0xff]
    %v1495 = vld [vmem:[#allocation4 + $0x2c8] sm:$0xff]
    %v1496 = vld [vmem:[#allocation4 + $0x2d0] sm:$0xff]
    %v1497 = vld [vmem:[#allocation4 + $0x2d8] sm:$0xff]
    %v1498 = vld [vmem:[#allocation4 + $0x2e0] sm:$0xff]
    %v1499 = vld [vmem:[#allocation4 + $0x2e8] sm:$0xff]
    %v1500 = vld [vmem:[#allocation4 + $0x2f0] sm:$0xff]
    %v1501 = vld [vmem:[#allocation4 + $0x2f8] sm:$0xff]
    %v1502 = vld [vmem:[#allocation4 + $0x300] sm:$0xff]
    %v1503 = vld [vmem:[#allocation4 + $0x308] sm:$0xff]
    %v1504 = vld [vmem:[#allocation4 + $0x310] sm:$0xff]
    %v1505 = vld [vmem:[#allocation4 + $0x318] sm:$0xff]
    %v1506 = vld [vmem:[#allocation4 + $0x320] sm:$0xff]
    %v1507 = vld [vmem:[#allocation4 + $0x328] sm:$0xff]
    %v1508 = vld [vmem:[#allocation4 + $0x330] sm:$0xff]
    %v1509 = vld [vmem:[#allocation4 + $0x338] sm:$0xff]
    %v1510 = vld [vmem:[#allocation4 + $0x340] sm:$0xff]
    %v1511 = vld [vmem:[#allocation4 + $0x348] sm:$0xff]
    %v1512 = vld [vmem:[#allocation4 + $0x350] sm:$0xff]
    %v1513 = vld [vmem:[#allocation4 + $0x358] sm:$0xff]
    %v1514 = vld [vmem:[#allocation4 + $0x360] sm:$0xff]
    %v1515 = vld [vmem:[#allocation4 + $0x368] sm:$0xff]
    %v1516 = vld [vmem:[#allocation4 + $0x370] sm:$0xff]
    %v1517 = vld [vmem:[#allocation4 + $0x378] sm:$0xff]
    %v1518 = vld [vmem:[#allocation4 + $0x380] sm:$0xff]
    %v1519 = vld [vmem:[#allocation4 + $0x388] sm:$0xff]
    %v1520 = vld [vmem:[#allocation4 + $0x390] sm:$0xff]
    %v1521 = vld [vmem:[#allocation4 + $0x398] sm:$0xff]
    %v1522 = vld [vmem:[#allocation4 + $0x3a0] sm:$0xff]
    %v1523 = vld [vmem:[#allocation4 + $0x3a8] sm:$0xff]
    %v1524 = vld [vmem:[#allocation4 + $0x3b0] sm:$0xff]
    %v1525 = vld [vmem:[#allocation4 + $0x3b8] sm:$0xff]
    %v1526 = vld [vmem:[#allocation4 + $0x3c0] sm:$0xff]
    %v1527 = vld [vmem:[#allocation4 + $0x3c8] sm:$0xff]
    %v1528 = vld [vmem:[#allocation4 + $0x3d0] sm:$0xff]
    %v1529 = vld [vmem:[#allocation4 + $0x3d8] sm:$0xff]
    %v1530 = vld [vmem:[#allocation4 + $0x3e0] sm:$0xff]
    %v1531 = vld [vmem:[#allocation4 + $0x3e8] sm:$0xff]
    %v1532 = vld [vmem:[#allocation4 + $0x3f0] sm:$0xff]
    %v1533 = vld [vmem:[#allocation4 + $0x3f8] sm:$0xff]
    %v1534 = vld [vmem:[%s5 + $0x9] sm:$0xff]
    %v1535 = vld [vmem:[%s5 + $0x11] sm:$0xff]
    %v1538 = vperm.slane %v1534, 0
    %v1539 = vperm.slane %v1534, 1
    %v1540 = vperm.slane %v1534, 2
    %v1541 = vperm.slane %v1534, 3
    %v1542 = vperm.slane %v1534, 4
    %v1543 = vperm.slane %v1534, 5
    %v1544 = vperm.slane %v1534, 6
    %v1545 = vperm.slane %v1534, 7
    %v1546 = vperm.slane %v1535, 0
    %v1547 = vperm.slane %v1535, 1
    %v1548 = vperm.slane %v1535, 2
    %v1549 = vperm.slane %v1535, 3
    %v1550 = vperm.slane %v1535, 4
    %v1551 = vperm.slane %v1535, 5
    %v1552 = vperm.slane %v1535, 6
    %v1553 = vperm.slane %v1535, 7
    %v1698 = vunpack.c.l.b16 %v1406
    %v1699 = vunpack.c.h.b16 %v1406
    %v1700 = vunpack.c.l.b16 %v1407
    %v1701 = vunpack.c.h.b16 %v1407
    %v1702 = vunpack.c.l.b16 %v1408
    %v1703 = vunpack.c.h.b16 %v1408
    %v1704 = vunpack.c.l.b16 %v1409
    %v1705 = vunpack.c.h.b16 %v1409
    %v1706 = vunpack.c.l.b16 %v1410
    %v1707 = vunpack.c.h.b16 %v1410
    %v1708 = vunpack.c.l.b16 %v1411
    %v1709 = vunpack.c.h.b16 %v1411
    %v1710 = vunpack.c.l.b16 %v1412
    %v1711 = vunpack.c.h.b16 %v1412
    %v1712 = vunpack.c.l.b16 %v1413
    %v1713 = vunpack.c.h.b16 %v1413
    %v1714 = vunpack.c.l.b16 %v1414
    %v1715 = vunpack.c.h.b16 %v1414
    %v1716 = vunpack.c.l.b16 %v1415
    %v1717 = vunpack.c.h.b16 %v1415
    %v1718 = vunpack.c.l.b16 %v1416
    %v1719 = vunpack.c.h.b16 %v1416
    %v1720 = vunpack.c.l.b16 %v1417
    %v1721 = vunpack.c.h.b16 %v1417
    %v1722 = vunpack.c.l.b16 %v1418
    %v1723 = vunpack.c.h.b16 %v1418
    %v1724 = vunpack.c.l.b16 %v1419
    %v1725 = vunpack.c.h.b16 %v1419
    %v1726 = vunpack.c.l.b16 %v1420
    %v1727 = vunpack.c.h.b16 %v1420
    %v1728 = vunpack.c.l.b16 %v1421
    %v1729 = vunpack.c.h.b16 %v1421
    %v1730 = vunpack.c.l.b16 %v1422
    %v1731 = vunpack.c.h.b16 %v1422
    %v1732 = vunpack.c.l.b16 %v1423
    %v1733 = vunpack.c.h.b16 %v1423
    %v1734 = vunpack.c.l.b16 %v1424
    %v1735 = vunpack.c.h.b16 %v1424
    %v1736 = vunpack.c.l.b16 %v1425
    %v1737 = vunpack.c.h.b16 %v1425
    %v1738 = vunpack.c.l.b16 %v1426
    %v1739 = vunpack.c.h.b16 %v1426
    %v1740 = vunpack.c.l.b16 %v1427
    %v1741 = vunpack.c.h.b16 %v1427
    %v1742 = vunpack.c.l.b16 %v1428
    %v1743 = vunpack.c.h.b16 %v1428
    %v1744 = vunpack.c.l.b16 %v1429
    %v1745 = vunpack.c.h.b16 %v1429
    %v1746 = vunpack.c.l.b16 %v1430
    %v1747 = vunpack.c.h.b16 %v1430
    %v1748 = vunpack.c.l.b16 %v1431
    %v1749 = vunpack.c.h.b16 %v1431
    %v1750 = vunpack.c.l.b16 %v1432
    %v1751 = vunpack.c.h.b16 %v1432
    %v1752 = vunpack.c.l.b16 %v1433
    %v1753 = vunpack.c.h.b16 %v1433
    %v1754 = vunpack.c.l.b16 %v1434
    %v1755 = vunpack.c.h.b16 %v1434
    %v1756 = vunpack.c.l.b16 %v1435
    %v1757 = vunpack.c.h.b16 %v1435
    %v1758 = vunpack.c.l.b16 %v1436
    %v1759 = vunpack.c.h.b16 %v1436
    %v1760 = vunpack.c.l.b16 %v1437
    %v1761 = vunpack.c.h.b16 %v1437
    %v1762 = vunpack.c.l.b16 %v1438
    %v1763 = vunpack.c.h.b16 %v1438
    %v1764 = vunpack.c.l.b16 %v1439
    %v1765 = vunpack.c.h.b16 %v1439
    %v1766 = vunpack.c.l.b16 %v1440
    %v1767 = vunpack.c.h.b16 %v1440
    %v1768 = vunpack.c.l.b16 %v1441
    %v1769 = vunpack.c.h.b16 %v1441
    %v1770 = vunpack.c.l.b16 %v1442
    %v1771 = vunpack.c.h.b16 %v1442
    %v1772 = vunpack.c.l.b16 %v1443
    %v1773 = vunpack.c.h.b16 %v1443
    %v1774 = vunpack.c.l.b16 %v1444
    %v1775 = vunpack.c.h.b16 %v1444
    %v1776 = vunpack.c.l.b16 %v1445
    %v1777 = vunpack.c.h.b16 %v1445
    %v1778 = vunpack.c.l.b16 %v1446
    %v1779 = vunpack.c.h.b16 %v1446
    %v1780 = vunpack.c.l.b16 %v1447
    %v1781 = vunpack.c.h.b16 %v1447
    %v1782 = vunpack.c.l.b16 %v1448
    %v1783 = vunpack.c.h.b16 %v1448
    %v1784 = vunpack.c.l.b16 %v1449
    %v1785 = vunpack.c.h.b16 %v1449
    %v1786 = vunpack.c.l.b16 %v1450
    %v1787 = vunpack.c.h.b16 %v1450
    %v1788 = vunpack.c.l.b16 %v1451
    %v1789 = vunpack.c.h.b16 %v1451
    %v1790 = vunpack.c.l.b16 %v1452
    %v1791 = vunpack.c.h.b16 %v1452
    %v1792 = vunpack.c.l.b16 %v1453
    %v1793 = vunpack.c.h.b16 %v1453
    %v1794 = vunpack.c.l.b16 %v1454
    %v1795 = vunpack.c.h.b16 %v1454
    %v1796 = vunpack.c.l.b16 %v1455
    %v1797 = vunpack.c.h.b16 %v1455
    %v1798 = vunpack.c.l.b16 %v1456
    %v1799 = vunpack.c.h.b16 %v1456
    %v1800 = vunpack.c.l.b16 %v1457
    %v1801 = vunpack.c.h.b16 %v1457
    %v1802 = vunpack.c.l.b16 %v1458
    %v1803 = vunpack.c.h.b16 %v1458
    %v1804 = vunpack.c.l.b16 %v1459
    %v1805 = vunpack.c.h.b16 %v1459
    %v1806 = vunpack.c.l.b16 %v1460
    %v1807 = vunpack.c.h.b16 %v1460
    %v1808 = vunpack.c.l.b16 %v1461
    %v1809 = vunpack.c.h.b16 %v1461
    %v1810 = vunpack.c.l.b16 %v1462
    %v1811 = vunpack.c.h.b16 %v1462
    %v1812 = vunpack.c.l.b16 %v1463
    %v1813 = vunpack.c.h.b16 %v1463
    %v1814 = vunpack.c.l.b16 %v1464
    %v1815 = vunpack.c.h.b16 %v1464
    %v1816 = vunpack.c.l.b16 %v1465
    %v1817 = vunpack.c.h.b16 %v1465
    %v1818 = vunpack.c.l.b16 %v1466
    %v1819 = vunpack.c.h.b16 %v1466
    %v1820 = vunpack.c.l.b16 %v1467
    %v1821 = vunpack.c.h.b16 %v1467
    %v1822 = vunpack.c.l.b16 %v1468
    %v1823 = vunpack.c.h.b16 %v1468
    %v1824 = vunpack.c.l.b16 %v1469
    %v1825 = vunpack.c.h.b16 %v1469
    %v1826 = vunpack.c.l.b16 %v1470
    %v1827 = vunpack.c.h.b16 %v1470
    %v1828 = vunpack.c.l.b16 %v1471
    %v1829 = vunpack.c.h.b16 %v1471
    %v1830 = vunpack.c.l.b16 %v1472
    %v1831 = vunpack.c.h.b16 %v1472
    %v1832 = vunpack.c.l.b16 %v1473
    %v1833 = vunpack.c.h.b16 %v1473
    %v1834 = vunpack.c.l.b16 %v1474
    %v1835 = vunpack.c.h.b16 %v1474
    %v1836 = vunpack.c.l.b16 %v1475
    %v1837 = vunpack.c.h.b16 %v1475
    %v1838 = vunpack.c.l.b16 %v1476
    %v1839 = vunpack.c.h.b16 %v1476
    %v1840 = vunpack.c.l.b16 %v1477
    %v1841 = vunpack.c.h.b16 %v1477
    %v1842 = vunpack.c.l.b16 %v1478
    %v1843 = vunpack.c.h.b16 %v1478
    %v1844 = vunpack.c.l.b16 %v1479
    %v1845 = vunpack.c.h.b16 %v1479
    %v1846 = vunpack.c.l.b16 %v1480
    %v1847 = vunpack.c.h.b16 %v1480
    %v1848 = vunpack.c.l.b16 %v1481
    %v1849 = vunpack.c.h.b16 %v1481
    %v1850 = vunpack.c.l.b16 %v1482
    %v1851 = vunpack.c.h.b16 %v1482
    %v1852 = vunpack.c.l.b16 %v1483
    %v1853 = vunpack.c.h.b16 %v1483
    %v1854 = vunpack.c.l.b16 %v1484
    %v1855 = vunpack.c.h.b16 %v1484
    %v1856 = vunpack.c.l.b16 %v1485
    %v1857 = vunpack.c.h.b16 %v1485
    %v1858 = vunpack.c.l.b16 %v1486
    %v1859 = vunpack.c.h.b16 %v1486
    %v1860 = vunpack.c.l.b16 %v1487
    %v1861 = vunpack.c.h.b16 %v1487
    %v1862 = vunpack.c.l.b16 %v1488
    %v1863 = vunpack.c.h.b16 %v1488
    %v1864 = vunpack.c.l.b16 %v1489
    %v1865 = vunpack.c.h.b16 %v1489
    %v1866 = vunpack.c.l.b16 %v1490
    %v1867 = vunpack.c.h.b16 %v1490
    %v1868 = vunpack.c.l.b16 %v1491
    %v1869 = vunpack.c.h.b16 %v1491
    %v1870 = vunpack.c.l.b16 %v1492
    %v1871 = vunpack.c.h.b16 %v1492
    %v1872 = vunpack.c.l.b16 %v1493
    %v1873 = vunpack.c.h.b16 %v1493
    %v1874 = vunpack.c.l.b16 %v1494
    %v1875 = vunpack.c.h.b16 %v1494
    %v1876 = vunpack.c.l.b16 %v1495
    %v1877 = vunpack.c.h.b16 %v1495
    %v1878 = vunpack.c.l.b16 %v1496
    %v1879 = vunpack.c.h.b16 %v1496
    %v1880 = vunpack.c.l.b16 %v1497
    %v1881 = vunpack.c.h.b16 %v1497
    %v1882 = vunpack.c.l.b16 %v1498
    %v1883 = vunpack.c.h.b16 %v1498
    %v1884 = vunpack.c.l.b16 %v1499
    %v1885 = vunpack.c.h.b16 %v1499
    %v1886 = vunpack.c.l.b16 %v1500
    %v1887 = vunpack.c.h.b16 %v1500
    %v1888 = vunpack.c.l.b16 %v1501
    %v1889 = vunpack.c.h.b16 %v1501
    %v1890 = vunpack.c.l.b16 %v1502
    %v1891 = vunpack.c.h.b16 %v1502
    %v1892 = vunpack.c.l.b16 %v1503
    %v1893 = vunpack.c.h.b16 %v1503
    %v1894 = vunpack.c.l.b16 %v1504
    %v1895 = vunpack.c.h.b16 %v1504
    %v1896 = vunpack.c.l.b16 %v1505
    %v1897 = vunpack.c.h.b16 %v1505
    %v1898 = vunpack.c.l.b16 %v1506
    %v1899 = vunpack.c.h.b16 %v1506
    %v1900 = vunpack.c.l.b16 %v1507
    %v1901 = vunpack.c.h.b16 %v1507
    %v1902 = vunpack.c.l.b16 %v1508
    %v1903 = vunpack.c.h.b16 %v1508
    %v1904 = vunpack.c.l.b16 %v1509
    %v1905 = vunpack.c.h.b16 %v1509
    %v1906 = vunpack.c.l.b16 %v1510
    %v1907 = vunpack.c.h.b16 %v1510
    %v1908 = vunpack.c.l.b16 %v1511
    %v1909 = vunpack.c.h.b16 %v1511
    %v1910 = vunpack.c.l.b16 %v1512
    %v1911 = vunpack.c.h.b16 %v1512
    %v1912 = vunpack.c.l.b16 %v1513
    %v1913 = vunpack.c.h.b16 %v1513
    %v1914 = vunpack.c.l.b16 %v1514
    %v1915 = vunpack.c.h.b16 %v1514
    %v1916 = vunpack.c.l.b16 %v1515
    %v1917 = vunpack.c.h.b16 %v1515
    %v1918 = vunpack.c.l.b16 %v1516
    %v1919 = vunpack.c.h.b16 %v1516
    %v1920 = vunpack.c.l.b16 %v1517
    %v1921 = vunpack.c.h.b16 %v1517
    %v1922 = vunpack.c.l.b16 %v1518
    %v1923 = vunpack.c.h.b16 %v1518
    %v1924 = vunpack.c.l.b16 %v1519
    %v1925 = vunpack.c.h.b16 %v1519
    %v1926 = vunpack.c.l.b16 %v1520
    %v1927 = vunpack.c.h.b16 %v1520
    %v1928 = vunpack.c.l.b16 %v1521
    %v1929 = vunpack.c.h.b16 %v1521
    %v1930 = vunpack.c.l.b16 %v1522
    %v1931 = vunpack.c.h.b16 %v1522
    %v1932 = vunpack.c.l.b16 %v1523
    %v1933 = vunpack.c.h.b16 %v1523
    %v1934 = vunpack.c.l.b16 %v1524
    %v1935 = vunpack.c.h.b16 %v1524
    %v1936 = vunpack.c.l.b16 %v1525
    %v1937 = vunpack.c.h.b16 %v1525
    %v1938 = vunpack.c.l.b16 %v1526
    %v1939 = vunpack.c.h.b16 %v1526
    %v1940 = vunpack.c.l.b16 %v1527
    %v1941 = vunpack.c.h.b16 %v1527
    %v1942 = vunpack.c.l.b16 %v1528
    %v1943 = vunpack.c.h.b16 %v1528
    %v1944 = vunpack.c.l.b16 %v1529
    %v1945 = vunpack.c.h.b16 %v1529
    %v1946 = vunpack.c.l.b16 %v1530
    %v1947 = vunpack.c.h.b16 %v1530
    %v1948 = vunpack.c.l.b16 %v1531
    %v1949 = vunpack.c.h.b16 %v1531
    %v1950 = vunpack.c.l.b16 %v1532
    %v1951 = vunpack.c.h.b16 %v1532
    %v1952 = vunpack.c.l.b16 %v1533
    %v1953 = vunpack.c.h.b16 %v1533
    %v1954 = vpack.c.b16 %v1714, %v1698
    %v1955 = vpack.c.b16 %v1715, %v1699
    %v1956 = vpack.c.b16 %v1716, %v1700
    %v1957 = vpack.c.b16 %v1717, %v1701
    %v1958 = vpack.c.b16 %v1718, %v1702
    %v1959 = vpack.c.b16 %v1719, %v1703
    %v1960 = vpack.c.b16 %v1720, %v1704
    %v1961 = vpack.c.b16 %v1721, %v1705
    %v1962 = vpack.c.b16 %v1722, %v1706
    %v1963 = vpack.c.b16 %v1723, %v1707
    %v1964 = vpack.c.b16 %v1724, %v1708
    %v1965 = vpack.c.b16 %v1725, %v1709
    %v1966 = vpack.c.b16 %v1726, %v1710
    %v1967 = vpack.c.b16 %v1727, %v1711
    %v1968 = vpack.c.b16 %v1728, %v1712
    %v1969 = vpack.c.b16 %v1729, %v1713
    %v1970 = vpack.c.b16 %v1746, %v1730
    %v1971 = vpack.c.b16 %v1747, %v1731
    %v1972 = vpack.c.b16 %v1748, %v1732
    %v1973 = vpack.c.b16 %v1749, %v1733
    %v1974 = vpack.c.b16 %v1750, %v1734
    %v1975 = vpack.c.b16 %v1751, %v1735
    %v1976 = vpack.c.b16 %v1752, %v1736
    %v1977 = vpack.c.b16 %v1753, %v1737
    %v1978 = vpack.c.b16 %v1754, %v1738
    %v1979 = vpack.c.b16 %v1755, %v1739
    %v1980 = vpack.c.b16 %v1756, %v1740
    %v1981 = vpack.c.b16 %v1757, %v1741
    %v1982 = vpack.c.b16 %v1758, %v1742
    %v1983 = vpack.c.b16 %v1759, %v1743
    %v1984 = vpack.c.b16 %v1760, %v1744
    %v1985 = vpack.c.b16 %v1761, %v1745
    %v1986 = vpack.c.b16 %v1778, %v1762
    %v1987 = vpack.c.b16 %v1779, %v1763
    %v1988 = vpack.c.b16 %v1780, %v1764
    %v1989 = vpack.c.b16 %v1781, %v1765
    %v1990 = vpack.c.b16 %v1782, %v1766
    %v1991 = vpack.c.b16 %v1783, %v1767
    %v1992 = vpack.c.b16 %v1784, %v1768
    %v1993 = vpack.c.b16 %v1785, %v1769
    %v1994 = vpack.c.b16 %v1786, %v1770
    %v1995 = vpack.c.b16 %v1787, %v1771
    %v1996 = vpack.c.b16 %v1788, %v1772
    %v1997 = vpack.c.b16 %v1789, %v1773
    %v1998 = vpack.c.b16 %v1790, %v1774
    %v1999 = vpack.c.b16 %v1791, %v1775
    %v2000 = vpack.c.b16 %v1792, %v1776
    %v2001 = vpack.c.b16 %v1793, %v1777
    %v2002 = vpack.c.b16 %v1810, %v1794
    %v2003 = vpack.c.b16 %v1811, %v1795
    %v2004 = vpack.c.b16 %v1812, %v1796
    %v2005 = vpack.c.b16 %v1813, %v1797
    %v2006 = vpack.c.b16 %v1814, %v1798
    %v2007 = vpack.c.b16 %v1815, %v1799
    %v2008 = vpack.c.b16 %v1816, %v1800
    %v2009 = vpack.c.b16 %v1817, %v1801
    %v2010 = vpack.c.b16 %v1818, %v1802
    %v2011 = vpack.c.b16 %v1819, %v1803
    %v2012 = vpack.c.b16 %v1820, %v1804
    %v2013 = vpack.c.b16 %v1821, %v1805
    %v2014 = vpack.c.b16 %v1822, %v1806
    %v2015 = vpack.c.b16 %v1823, %v1807
    %v2016 = vpack.c.b16 %v1824, %v1808
    %v2017 = vpack.c.b16 %v1825, %v1809
    %v2018 = vpack.c.b16 %v1842, %v1826
    %v2019 = vpack.c.b16 %v1843, %v1827
    %v2020 = vpack.c.b16 %v1844, %v1828
    %v2021 = vpack.c.b16 %v1845, %v1829
    %v2022 = vpack.c.b16 %v1846, %v1830
    %v2023 = vpack.c.b16 %v1847, %v1831
    %v2024 = vpack.c.b16 %v1848, %v1832
    %v2025 = vpack.c.b16 %v1849, %v1833
    %v2026 = vpack.c.b16 %v1850, %v1834
    %v2027 = vpack.c.b16 %v1851, %v1835
    %v2028 = vpack.c.b16 %v1852, %v1836
    %v2029 = vpack.c.b16 %v1853, %v1837
    %v2030 = vpack.c.b16 %v1854, %v1838
    %v2031 = vpack.c.b16 %v1855, %v1839
    %v2032 = vpack.c.b16 %v1856, %v1840
    %v2033 = vpack.c.b16 %v1857, %v1841
    %v2034 = vpack.c.b16 %v1874, %v1858
    %v2035 = vpack.c.b16 %v1875, %v1859
    %v2036 = vpack.c.b16 %v1876, %v1860
    %v2037 = vpack.c.b16 %v1877, %v1861
    %v2038 = vpack.c.b16 %v1878, %v1862
    %v2039 = vpack.c.b16 %v1879, %v1863
    %v2040 = vpack.c.b16 %v1880, %v1864
    %v2041 = vpack.c.b16 %v1881, %v1865
    %v2042 = vpack.c.b16 %v1882, %v1866
    %v2043 = vpack.c.b16 %v1883, %v1867
    %v2044 = vpack.c.b16 %v1884, %v1868
    %v2045 = vpack.c.b16 %v1885, %v1869
    %v2046 = vpack.c.b16 %v1886, %v1870
    %v2047 = vpack.c.b16 %v1887, %v1871
    %v2048 = vpack.c.b16 %v1888, %v1872
    %v2049 = vpack.c.b16 %v1889, %v1873
    %v2050 = vpack.c.b16 %v1906, %v1890
    %v2051 = vpack.c.b16 %v1907, %v1891
    %v2052 = vpack.c.b16 %v1908, %v1892
    %v2053 = vpack.c.b16 %v1909, %v1893
    %v2054 = vpack.c.b16 %v1910, %v1894
    %v2055 = vpack.c.b16 %v1911, %v1895
    %v2056 = vpack.c.b16 %v1912, %v1896
    %v2057 = vpack.c.b16 %v1913, %v1897
    %v2058 = vpack.c.b16 %v1914, %v1898
    %v2059 = vpack.c.b16 %v1915, %v1899
    %v2060 = vpack.c.b16 %v1916, %v1900
    %v2061 = vpack.c.b16 %v1917, %v1901
    %v2062 = vpack.c.b16 %v1918, %v1902
    %v2063 = vpack.c.b16 %v1919, %v1903
    %v2064 = vpack.c.b16 %v1920, %v1904
    %v2065 = vpack.c.b16 %v1921, %v1905
    %v2066 = vpack.c.b16 %v1938, %v1922
    %v2067 = vpack.c.b16 %v1939, %v1923
    %v2068 = vpack.c.b16 %v1940, %v1924
    %v2069 = vpack.c.b16 %v1941, %v1925
    %v2070 = vpack.c.b16 %v1942, %v1926
    %v2071 = vpack.c.b16 %v1943, %v1927
    %v2072 = vpack.c.b16 %v1944, %v1928
    %v2073 = vpack.c.b16 %v1945, %v1929
    %v2074 = vpack.c.b16 %v1946, %v1930
    %v2075 = vpack.c.b16 %v1947, %v1931
    %v2076 = vpack.c.b16 %v1948, %v1932
    %v2077 = vpack.c.b16 %v1949, %v1933
    %v2078 = vpack.c.b16 %v1950, %v1934
    %v2079 = vpack.c.b16 %v1951, %v1935
    %v2080 = vpack.c.b16 %v1952, %v1936
    %v2081 = vpack.c.b16 %v1953, %v1937
    %2210 = vmatpush.bf16.msra.mxu0 %v2066
    %2211 = vmatpush.bf16.msra.mxu0 %v2050
    %2212 = vmatpush.bf16.msra.mxu0 %v2034
    %2213 = vmatpush.bf16.msra.mxu0 %v2018
    %2214 = vmatpush.bf16.msra.mxu0 %v2002
    %2215 = vmatpush.bf16.msra.mxu0 %v1986
    %2216 = vmatpush.bf16.msra.mxu0 %v1970
    %2217 = vmatpush.bf16.msra.mxu0 %v1954
    %2218 = vmatmul.bf16.gmra.mxu0 %v1405
    %v2219 = vpop.f32.mrf.mxu0
    %v2220 = vadd.f32 %v1538, %v2219
    %v2221 = vpop.f32.mrf.mxu0
    %2222 = vdwg.mxu0
    %2223 = vmatpush.bf16.msra.mxu0 %v2067
    %2224 = vmatpush.bf16.msra.mxu0 %v2051
    %2225 = vmatpush.bf16.msra.mxu0 %v2035
    %2226 = vmatpush.bf16.msra.mxu0 %v2019
    %2227 = vmatpush.bf16.msra.mxu0 %v2003
    %2228 = vmatpush.bf16.msra.mxu0 %v1987
    %2229 = vmatpush.bf16.msra.mxu0 %v1971
    %2230 = vmatpush.bf16.msra.mxu0 %v1955
    %2231 = vmatmul.bf16.gmra.mxu0 %v1405
    %v2232 = vpop.f32.mrf.mxu0
    %v2233 = vadd.f32 %v1539, %v2232
    %v2234 = vpop.f32.mrf.mxu0
    %2235 = vdwg.mxu0
    %2236 = vmatpush.bf16.msra.mxu0 %v2068
    %2237 = vmatpush.bf16.msra.mxu0 %v2052
    %2238 = vmatpush.bf16.msra.mxu0 %v2036
    %2239 = vmatpush.bf16.msra.mxu0 %v2020
    %2240 = vmatpush.bf16.msra.mxu0 %v2004
    %2241 = vmatpush.bf16.msra.mxu0 %v1988
    %2242 = vmatpush.bf16.msra.mxu0 %v1972
    %2243 = vmatpush.bf16.msra.mxu0 %v1956
    %2244 = vmatmul.bf16.gmra.mxu0 %v1405
    %v2245 = vpop.f32.mrf.mxu0
    %v2246 = vadd.f32 %v1540, %v2245
    %v2247 = vpop.f32.mrf.mxu0
    %2248 = vdwg.mxu0
    %2249 = vmatpush.bf16.msra.mxu0 %v2069
    %2250 = vmatpush.bf16.msra.mxu0 %v2053
    %2251 = vmatpush.bf16.msra.mxu0 %v2037
    %2252 = vmatpush.bf16.msra.mxu0 %v2021
    %2253 = vmatpush.bf16.msra.mxu0 %v2005
    %2254 = vmatpush.bf16.msra.mxu0 %v1989
    %2255 = vmatpush.bf16.msra.mxu0 %v1973
    %2256 = vmatpush.bf16.msra.mxu0 %v1957
    %2257 = vmatmul.bf16.gmra.mxu0 %v1405
    %v2258 = vpop.f32.mrf.mxu0
    %v2259 = vadd.f32 %v1541, %v2258
    %v2260 = vpop.f32.mrf.mxu0
    %2261 = vdwg.mxu0
    %2262 = vmatpush.bf16.msra.mxu0 %v2070
    %2263 = vmatpush.bf16.msra.mxu0 %v2054
    %2264 = vmatpush.bf16.msra.mxu0 %v2038
    %2265 = vmatpush.bf16.msra.mxu0 %v2022
    %2266 = vmatpush.bf16.msra.mxu0 %v2006
    %2267 = vmatpush.bf16.msra.mxu0 %v1990
    %2268 = vmatpush.bf16.msra.mxu0 %v1974
    %2269 = vmatpush.bf16.msra.mxu0 %v1958
    %2270 = vmatmul.bf16.gmra.mxu0 %v1405
    %v2271 = vpop.f32.mrf.mxu0
    %v2272 = vadd.f32 %v1542, %v2271
    %v2273 = vpop.f32.mrf.mxu0
    %2274 = vdwg.mxu0
    %2275 = vmatpush.bf16.msra.mxu0 %v2071
    %2276 = vmatpush.bf16.msra.mxu0 %v2055
    %2277 = vmatpush.bf16.msra.mxu0 %v2039
    %2278 = vmatpush.bf16.msra.mxu0 %v2023
    %2279 = vmatpush.bf16.msra.mxu0 %v2007
    %2280 = vmatpush.bf16.msra.mxu0 %v1991
    %2281 = vmatpush.bf16.msra.mxu0 %v1975
    %2282 = vmatpush.bf16.msra.mxu0 %v1959
    %2283 = vmatmul.bf16.gmra.mxu0 %v1405
    %v2284 = vpop.f32.mrf.mxu0
    %v2285 = vadd.f32 %v1543, %v2284
    %v2286 = vpop.f32.mrf.mxu0
    %2287 = vdwg.mxu0
    %2288 = vmatpush.bf16.msra.mxu0 %v2072
    %2289 = vmatpush.bf16.msra.mxu0 %v2056
    %2290 = vmatpush.bf16.msra.mxu0 %v2040
    %2291 = vmatpush.bf16.msra.mxu0 %v2024
    %2292 = vmatpush.bf16.msra.mxu0 %v2008
    %2293 = vmatpush.bf16.msra.mxu0 %v1992
    %2294 = vmatpush.bf16.msra.mxu0 %v1976
    %2295 = vmatpush.bf16.msra.mxu0 %v1960
    %2296 = vmatmul.bf16.gmra.mxu0 %v1405
    %v2297 = vpop.f32.mrf.mxu0
    %v2298 = vadd.f32 %v1544, %v2297
    %v2299 = vpop.f32.mrf.mxu0
    %2300 = vdwg.mxu0
    %2301 = vmatpush.bf16.msra.mxu0 %v2073
    %2302 = vmatpush.bf16.msra.mxu0 %v2057
    %2303 = vmatpush.bf16.msra.mxu0 %v2041
    %2304 = vmatpush.bf16.msra.mxu0 %v2025
    %2305 = vmatpush.bf16.msra.mxu0 %v2009
    %2306 = vmatpush.bf16.msra.mxu0 %v1993
    %2307 = vmatpush.bf16.msra.mxu0 %v1977
    %2308 = vmatpush.bf16.msra.mxu0 %v1961
    %2309 = vmatmul.bf16.gmra.mxu0 %v1405
    %v2310 = vpop.f32.mrf.mxu0
    %v2311 = vadd.f32 %v1545, %v2310
    %v2312 = vpop.f32.mrf.mxu0
    %2313 = vdwg.mxu0
    %2314 = vmatpush.bf16.msra.mxu0 %v2074
    %2315 = vmatpush.bf16.msra.mxu0 %v2058
    %2316 = vmatpush.bf16.msra.mxu0 %v2042
    %2317 = vmatpush.bf16.msra.mxu0 %v2026
    %2318 = vmatpush.bf16.msra.mxu0 %v2010
    %2319 = vmatpush.bf16.msra.mxu0 %v1994
    %2320 = vmatpush.bf16.msra.mxu0 %v1978
    %2321 = vmatpush.bf16.msra.mxu0 %v1962
    %2322 = vmatmul.bf16.gmra.mxu0 %v1405
    %v2323 = vpop.f32.mrf.mxu0
    %v2324 = vadd.f32 %v1546, %v2323
    %v2325 = vpop.f32.mrf.mxu0
    %2326 = vdwg.mxu0
    %2327 = vmatpush.bf16.msra.mxu0 %v2075
    %2328 = vmatpush.bf16.msra.mxu0 %v2059
    %2329 = vmatpush.bf16.msra.mxu0 %v2043
    %2330 = vmatpush.bf16.msra.mxu0 %v2027
    %2331 = vmatpush.bf16.msra.mxu0 %v2011
    %2332 = vmatpush.bf16.msra.mxu0 %v1995
    %2333 = vmatpush.bf16.msra.mxu0 %v1979
    %2334 = vmatpush.bf16.msra.mxu0 %v1963
    %2335 = vmatmul.bf16.gmra.mxu0 %v1405
    %v2336 = vpop.f32.mrf.mxu0
    %v2337 = vadd.f32 %v1547, %v2336
    %v2338 = vpop.f32.mrf.mxu0
    %2339 = vdwg.mxu0
    %2340 = vmatpush.bf16.msra.mxu0 %v2076
    %2341 = vmatpush.bf16.msra.mxu0 %v2060
    %2342 = vmatpush.bf16.msra.mxu0 %v2044
    %2343 = vmatpush.bf16.msra.mxu0 %v2028
    %2344 = vmatpush.bf16.msra.mxu0 %v2012
    %2345 = vmatpush.bf16.msra.mxu0 %v1996
    %2346 = vmatpush.bf16.msra.mxu0 %v1980
    %2347 = vmatpush.bf16.msra.mxu0 %v1964
    %2348 = vmatmul.bf16.gmra.mxu0 %v1405
    %v2349 = vpop.f32.mrf.mxu0
    %v2350 = vadd.f32 %v1548, %v2349
    %v2351 = vpop.f32.mrf.mxu0
    %2352 = vdwg.mxu0
    %2353 = vmatpush.bf16.msra.mxu0 %v2077
    %2354 = vmatpush.bf16.msra.mxu0 %v2061
    %2355 = vmatpush.bf16.msra.mxu0 %v2045
    %2356 = vmatpush.bf16.msra.mxu0 %v2029
    %2357 = vmatpush.bf16.msra.mxu0 %v2013
    %2358 = vmatpush.bf16.msra.mxu0 %v1997
    %2359 = vmatpush.bf16.msra.mxu0 %v1981
    %2360 = vmatpush.bf16.msra.mxu0 %v1965
    %2361 = vmatmul.bf16.gmra.mxu0 %v1405
    %v2362 = vpop.f32.mrf.mxu0
    %v2363 = vadd.f32 %v1549, %v2362
    %v2364 = vpop.f32.mrf.mxu0
    %2365 = vdwg.mxu0
    %2366 = vmatpush.bf16.msra.mxu0 %v2078
    %2367 = vmatpush.bf16.msra.mxu0 %v2062
    %2368 = vmatpush.bf16.msra.mxu0 %v2046
    %2369 = vmatpush.bf16.msra.mxu0 %v2030
    %2370 = vmatpush.bf16.msra.mxu0 %v2014
    %2371 = vmatpush.bf16.msra.mxu0 %v1998
    %2372 = vmatpush.bf16.msra.mxu0 %v1982
    %2373 = vmatpush.bf16.msra.mxu0 %v1966
    %2374 = vmatmul.bf16.gmra.mxu0 %v1405
    %v2375 = vpop.f32.mrf.mxu0
    %v2376 = vadd.f32 %v1550, %v2375
    %v2377 = vpop.f32.mrf.mxu0
    %2378 = vdwg.mxu0
    %2379 = vmatpush.bf16.msra.mxu0 %v2079
    %2380 = vmatpush.bf16.msra.mxu0 %v2063
    %2381 = vmatpush.bf16.msra.mxu0 %v2047
    %2382 = vmatpush.bf16.msra.mxu0 %v2031
    %2383 = vmatpush.bf16.msra.mxu0 %v2015
    %2384 = vmatpush.bf16.msra.mxu0 %v1999
    %2385 = vmatpush.bf16.msra.mxu0 %v1983
    %2386 = vmatpush.bf16.msra.mxu0 %v1967
    %2387 = vmatmul.bf16.gmra.mxu0 %v1405
    %v2388 = vpop.f32.mrf.mxu0
    %v2389 = vadd.f32 %v1551, %v2388
    %v2390 = vpop.f32.mrf.mxu0
    %2391 = vdwg.mxu0
    %2392 = vmatpush.bf16.msra.mxu0 %v2080
    %2393 = vmatpush.bf16.msra.mxu0 %v2064
    %2394 = vmatpush.bf16.msra.mxu0 %v2048
    %2395 = vmatpush.bf16.msra.mxu0 %v2032
    %2396 = vmatpush.bf16.msra.mxu0 %v2016
    %2397 = vmatpush.bf16.msra.mxu0 %v2000
    %2398 = vmatpush.bf16.msra.mxu0 %v1984
    %2399 = vmatpush.bf16.msra.mxu0 %v1968
    %2400 = vmatmul.bf16.gmra.mxu0 %v1405
    %v2401 = vpop.f32.mrf.mxu0
    %v2402 = vadd.f32 %v1552, %v2401
    %v2403 = vpop.f32.mrf.mxu0
    %2404 = vdwg.mxu0
    %2405 = vmatpush.bf16.msra.mxu0 %v2081
    %2406 = vmatpush.bf16.msra.mxu0 %v2065
    %2407 = vmatpush.bf16.msra.mxu0 %v2049
    %2408 = vmatpush.bf16.msra.mxu0 %v2033
    %2409 = vmatpush.bf16.msra.mxu0 %v2017
    %2410 = vmatpush.bf16.msra.mxu0 %v2001
    %2411 = vmatpush.bf16.msra.mxu0 %v1985
    %2412 = vmatpush.bf16.msra.mxu0 %v1969
    %2413 = vmatmul.bf16.gmra.mxu0 %v1405
    %v2414 = vpop.f32.mrf.mxu0
    %v2415 = vadd.f32 %v1553, %v2414
    %v2416 = vpop.f32.mrf.mxu0
    %2417 = vdwg.mxu0
    %v2418 = vxor.u32 %v2324, 2147483648
    %v2419 = vxor.u32 %v2337, 2147483648
    %v2420 = vxor.u32 %v2350, 2147483648
    %v2421 = vxor.u32 %v2363, 2147483648
    %v2422 = vxor.u32 %v2376, 2147483648
    %v2423 = vxor.u32 %v2389, 2147483648
    %v2424 = vxor.u32 %v2402, 2147483648
    %v2425 = vxor.u32 %v2415, 2147483648
    %v2426 = vmul.f32 %v2418, 1.442695
    %v2427 = vpow.pop %v2426
    %v2428 = vmul.f32 %v2419, 1.442695
    %v2429 = vpow.pop %v2428
    %v2430 = vmul.f32 %v2420, 1.442695
    %v2431 = vpow.pop %v2430
    %v2432 = vmul.f32 %v2421, 1.442695
    %v2433 = vpow.pop %v2432
    %v2434 = vmul.f32 %v2422, 1.442695
    %v2435 = vpow.pop %v2434
    %v2436 = vmul.f32 %v2423, 1.442695
    %v2437 = vpow.pop %v2436
    %v2438 = vmul.f32 %v2424, 1.442695
    %v2439 = vpow.pop %v2438
    %v2440 = vmul.f32 %v2425, 1.442695
    %v2441 = vpow.pop %v2440
    %v2442 = vadd.f32 %v2427, 1.0
    %v2443 = vadd.f32 %v2429, 1.0
    %v2444 = vadd.f32 %v2431, 1.0
    %v2445 = vadd.f32 %v2433, 1.0
    %v2446 = vadd.f32 %v2435, 1.0
    %v2447 = vadd.f32 %v2437, 1.0
    %v2448 = vadd.f32 %v2439, 1.0
    %v2449 = vadd.f32 %v2441, 1.0
    %v2450 = vrcp.pop %v2442
    %v2451 = vmul.f32 %v2442, %v2450
    %v2452 = vsub.f32 1.0, %v2451
    %v2453 = vmul.f32 %v2450, %v2452
    %v2454 = vadd.f32 %v2450, %v2453
    %vm2455 = vweird.f32 %v2442
    %vm2456 = vweird.f32 %v2450
    %vm2457 = vmor %vm2455, %vm2456
    %v2458 = vsel %vm2457, %v2450, %v2454
    %v2459 = vand.u32 2147483647, %v2442
    %vm2460 = vcmp.eq.f32.partialorder %v2459, 8.507059e+37
    %v2461 = vand.u32 %v2442, 2147483648
    %v2462 = vor.u32 1.1754944e-38, %v2461
    %v2463 = vsel %vm2460, %v2462, %v2458
    %v2464 = vmul.f32 1.0, %v2463
    %v2465 = vrcp.pop %v2443
    %v2466 = vmul.f32 %v2443, %v2465
    %v2467 = vsub.f32 1.0, %v2466
    %v2468 = vmul.f32 %v2465, %v2467
    %v2469 = vadd.f32 %v2465, %v2468
    %vm2470 = vweird.f32 %v2443
    %vm2471 = vweird.f32 %v2465
    %vm2472 = vmor %vm2470, %vm2471
    %v2473 = vsel %vm2472, %v2465, %v2469
    %v2474 = vand.u32 2147483647, %v2443
    %vm2475 = vcmp.eq.f32.partialorder %v2474, 8.507059e+37
    %v2476 = vand.u32 %v2443, 2147483648
    %v2477 = vor.u32 1.1754944e-38, %v2476
    %v2478 = vsel %vm2475, %v2477, %v2473
    %v2479 = vmul.f32 1.0, %v2478
    %v2480 = vrcp.pop %v2444
    %v2481 = vmul.f32 %v2444, %v2480
    %v2482 = vsub.f32 1.0, %v2481
    %v2483 = vmul.f32 %v2480, %v2482
    %v2484 = vadd.f32 %v2480, %v2483
    %vm2485 = vweird.f32 %v2444
    %vm2486 = vweird.f32 %v2480
    %vm2487 = vmor %vm2485, %vm2486
    %v2488 = vsel %vm2487, %v2480, %v2484
    %v2489 = vand.u32 2147483647, %v2444
    %vm2490 = vcmp.eq.f32.partialorder %v2489, 8.507059e+37
    %v2491 = vand.u32 %v2444, 2147483648
    %v2492 = vor.u32 1.1754944e-38, %v2491
    %v2493 = vsel %vm2490, %v2492, %v2488
    %v2494 = vmul.f32 1.0, %v2493
    %v2495 = vrcp.pop %v2445
    %v2496 = vmul.f32 %v2445, %v2495
    %v2497 = vsub.f32 1.0, %v2496
    %v2498 = vmul.f32 %v2495, %v2497
    %v2499 = vadd.f32 %v2495, %v2498
    %vm2500 = vweird.f32 %v2445
    %vm2501 = vweird.f32 %v2495
    %vm2502 = vmor %vm2500, %vm2501
    %v2503 = vsel %vm2502, %v2495, %v2499
    %v2504 = vand.u32 2147483647, %v2445
    %vm2505 = vcmp.eq.f32.partialorder %v2504, 8.507059e+37
    %v2506 = vand.u32 %v2445, 2147483648
    %v2507 = vor.u32 1.1754944e-38, %v2506
    %v2508 = vsel %vm2505, %v2507, %v2503
    %v2509 = vmul.f32 1.0, %v2508
    %v2510 = vrcp.pop %v2446
    %v2511 = vmul.f32 %v2446, %v2510
    %v2512 = vsub.f32 1.0, %v2511
    %v2513 = vmul.f32 %v2510, %v2512
    %v2514 = vadd.f32 %v2510, %v2513
    %vm2515 = vweird.f32 %v2446
    %vm2516 = vweird.f32 %v2510
    %vm2517 = vmor %vm2515, %vm2516
    %v2518 = vsel %vm2517, %v2510, %v2514
    %v2519 = vand.u32 2147483647, %v2446
    %vm2520 = vcmp.eq.f32.partialorder %v2519, 8.507059e+37
    %v2521 = vand.u32 %v2446, 2147483648
    %v2522 = vor.u32 1.1754944e-38, %v2521
    %v2523 = vsel %vm2520, %v2522, %v2518
    %v2524 = vmul.f32 1.0, %v2523
    %v2525 = vrcp.pop %v2447
    %v2526 = vmul.f32 %v2447, %v2525
    %v2527 = vsub.f32 1.0, %v2526
    %v2528 = vmul.f32 %v2525, %v2527
    %v2529 = vadd.f32 %v2525, %v2528
    %vm2530 = vweird.f32 %v2447
    %vm2531 = vweird.f32 %v2525
    %vm2532 = vmor %vm2530, %vm2531
    %v2533 = vsel %vm2532, %v2525, %v2529
    %v2534 = vand.u32 2147483647, %v2447
    %vm2535 = vcmp.eq.f32.partialorder %v2534, 8.507059e+37
    %v2536 = vand.u32 %v2447, 2147483648
    %v2537 = vor.u32 1.1754944e-38, %v2536
    %v2538 = vsel %vm2535, %v2537, %v2533
    %v2539 = vmul.f32 1.0, %v2538
    %v2540 = vrcp.pop %v2448
    %v2541 = vmul.f32 %v2448, %v2540
    %v2542 = vsub.f32 1.0, %v2541
    %v2543 = vmul.f32 %v2540, %v2542
    %v2544 = vadd.f32 %v2540, %v2543
    %vm2545 = vweird.f32 %v2448
    %vm2546 = vweird.f32 %v2540
    %vm2547 = vmor %vm2545, %vm2546
    %v2548 = vsel %vm2547, %v2540, %v2544
    %v2549 = vand.u32 2147483647, %v2448
    %vm2550 = vcmp.eq.f32.partialorder %v2549, 8.507059e+37
    %v2551 = vand.u32 %v2448, 2147483648
    %v2552 = vor.u32 1.1754944e-38, %v2551
    %v2553 = vsel %vm2550, %v2552, %v2548
    %v2554 = vmul.f32 1.0, %v2553
    %v2555 = vrcp.pop %v2449
    %v2556 = vmul.f32 %v2449, %v2555
    %v2557 = vsub.f32 1.0, %v2556
    %v2558 = vmul.f32 %v2555, %v2557
    %v2559 = vadd.f32 %v2555, %v2558
    %vm2560 = vweird.f32 %v2449
    %vm2561 = vweird.f32 %v2555
    %vm2562 = vmor %vm2560, %vm2561
    %v2563 = vsel %vm2562, %v2555, %v2559
    %v2564 = vand.u32 2147483647, %v2449
    %vm2565 = vcmp.eq.f32.partialorder %v2564, 8.507059e+37
    %v2566 = vand.u32 %v2449, 2147483648
    %v2567 = vor.u32 1.1754944e-38, %v2566
    %v2568 = vsel %vm2565, %v2567, %v2563
    %v2569 = vmul.f32 1.0, %v2568
    %v2570 = vmul.f32 %v2220, %v2464
    %v2571 = vmul.f32 %v2233, %v2479
    %v2572 = vmul.f32 %v2246, %v2494
    %v2573 = vmul.f32 %v2259, %v2509
    %v2574 = vmul.f32 %v2272, %v2524
    %v2575 = vmul.f32 %v2285, %v2539
    %v2576 = vmul.f32 %v2298, %v2554
    %v2577 = vmul.f32 %v2311, %v2569
    %2578 = vst [vmem:[%s6] sm:$0xff] %v2570
    %2579 = vst [vmem:[%s6 + $0x8] sm:$0xff] %v2571
    %2580 = vst [vmem:[%s6 + $0x10] sm:$0xff] %v2572
    %2581 = vst [vmem:[%s6 + $0x18] sm:$0xff] %v2573
    %2582 = vst [vmem:[%s6 + $0x20] sm:$0xff] %v2574
    %2583 = vst [vmem:[%s6 + $0x28] sm:$0xff] %v2575
    %2584 = vst [vmem:[%s6 + $0x30] sm:$0xff] %v2576
    %2585 = vst [vmem:[%s6 + $0x38] sm:$0xff] %v2577
    // Predicated region
    $region34: #{decode_mlp_forward.1} parent=1 // pred_check
      _
    $region35: #{decode_mlp_forward.1} parent=1 // pred_check_branch
      %2587 = sbr.rel (0) target = $region37
    $region36: #{decode_mlp_forward.1} parent=1 // pred_region
      _
    $region37: #{decode_mlp_forward.1} parent=1 // pred_fallthru
      _
    // Predicated region
    $region38: #{decode_mlp_forward.1} parent=1 // pred_check
      _
    $region39: #{decode_mlp_forward.1} parent=1 // pred_check_branch
      %2589 = sbr.rel (0) target = $region41
    $region40: #{decode_mlp_forward.1} parent=1 // pred_region
      _
    $region41: #{decode_mlp_forward.1} parent=1 // pred_fallthru
      _
    %2590 = vsyncpa [#allocation3], 1
    %2591 = vsyncpa [#allocation5], 1

</llo_original>
